<compile_context>
chip_gen: v7x
topology: tpu7x:2x2x1
jax: 0.10.0
libtpu: 0.0.40
codegen_flags: <defaults>
</compile_context>

<pallas_src>
import jax
import jax.numpy as jnp
from jax import lax
from jax.experimental import pallas as pl
from jax.experimental.pallas import tpu as pltpu


def _mlp_body(zr, zc, ea, w1_ref, b1_ref, w2_ref, b2_ref, out_ref):
    """Shared MLP tail: feat concat -> Linear1 -> ReLU -> Linear2."""
    diff = jnp.abs(zr - zc)                                   # VPU
    # Single fused K = 4*emb matmul (lane concat lands on the XLU slot).
    feat = jnp.concatenate([zr, zc, ea, diff], axis=1)        # (TE, 4*emb)
    h = jnp.dot(feat, w1_ref[...], preferred_element_type=jnp.float32)
    h = jnp.maximum(h + b1_ref[...], 0.0)
    # Dropout(p=0.3) -> identity in eval mode.
    o = jnp.dot(h, w2_ref[...], preferred_element_type=jnp.float32) + b2_ref[...]
    out_ref[...] = o.astype(out_ref.dtype)


def _edge_mlp_onehot_kernel(idx_ref, ea_ref, z_ref, w1_ref, b1_ref,
                            w2_ref, b2_ref, out_ref):
    """Small-N path: z is VMEM-resident, gather done as ONE one-hot matmul."""
    te = idx_ref.shape[0]
    n_nodes = z_ref.shape[0]

    # Stack row/col indices along the sublane axis -> one (2*TE, N) one-hot,
    # one MXU pass over z instead of two (z pushed once per tile).
    idx = jnp.concatenate([idx_ref[:, 0:1], idx_ref[:, 1:2]], axis=0)   # (2TE, 1)
    node_iota = lax.broadcasted_iota(jnp.int32, (2 * te, n_nodes), 1)
    onehot = (node_iota == idx).astype(jnp.float32)                     # (2TE, N)
    zrc = jnp.dot(onehot, z_ref[...], preferred_element_type=jnp.float32)
    zr = zrc[:te]                                                        # (TE, emb)
    zc = zrc[te:]                                                        # (TE, emb)

    _mlp_body(zr, zc, ea_ref[...], w1_ref, b1_ref, w2_ref, b2_ref, out_ref)


def _edge_mlp_gathered_kernel(zr_ref, zc_ref, ea_ref, w1_ref, b1_ref,
                              w2_ref, b2_ref, out_ref):
    """Large-N fallback: z[row]/z[col] gathered by XLA in the wrapper and
    streamed per edge tile (no O(TE*N) one-hot, no resident z)."""
    _mlp_body(zr_ref[...], zc_ref[...], ea_ref[...],
              w1_ref, b1_ref, w2_ref, b2_ref, out_ref)


def edge_mlp_classifier(z, edge_index, edge_attr, params, *,
                        tile_edges=1024, node_gather_threshold=512):
    """z: (N, emb) f32; edge_index: (2, E) int; edge_attr: (E, emb) f32.

    params = (w1, b1, w2, b2) with shapes (4*emb, H), (1, H), (H, C), (1, C).
    """
    w1, b1, w2, b2 = params
    n_nodes, emb = z.shape
    hidden = w1.shape[1]
    num_classes = w2.shape[1]
    assert w1.shape[0] == 4 * emb, "W1 must have 4*emb input rows"
    assert edge_attr.shape[1] == emb, "edge_attr feature dim must equal emb"

    e = edge_index.shape[1]
    num_tiles = pl.cdiv(e, tile_edges)
    e_pad = num_tiles * tile_edges

    z = z.astype(jnp.float32)
    row = edge_index[0].astype(jnp.int32)
    col = edge_index[1].astype(jnp.int32)
    edge_attr = edge_attr.astype(jnp.float32)
    if e_pad != e:
        pad = e_pad - e
        # Padded edges use node index 0 (valid); their outputs are discarded.
        row = jnp.concatenate([row, jnp.zeros((pad,), jnp.int32)])
        col = jnp.concatenate([col, jnp.zeros((pad,), jnp.int32)])
        edge_attr = jnp.concatenate(
            [edge_attr, jnp.zeros((pad, emb), edge_attr.dtype)], axis=0)

    edge_block = lambda c: pl.BlockSpec((tile_edges, c), lambda i: (i, 0))
    resident = lambda r, c: pl.BlockSpec((r, c), lambda i: (0, 0))

    weight_specs = [
        resident(4 * emb, hidden),          # W1 (resident)
        resident(1, hidden),                # b1
        resident(hidden, num_classes),      # W2
        resident(1, num_classes),           # b2
    ]
    out_spec = pl.BlockSpec((tile_edges, num_classes), lambda i: (i, 0))
    out_shape = jax.ShapeDtypeStruct((e_pad, num_classes), jnp.float32)
    compiler_params = pltpu.CompilerParams(
        dimension_semantics=("parallel",),
        vmem_limit_bytes=48 * 1024 * 1024)

    if n_nodes <= node_gather_threshold:
        # Small graph: keep z resident, gather in-kernel via one-hot matmul.
        idx = jnp.stack([row, col], axis=1)             # (E_pad, 2) int32
        out = pl.pallas_call(
            _edge_mlp_onehot_kernel,
            out_shape=out_shape,
            grid_spec=pl.GridSpec(
                grid=(num_tiles,),
                in_specs=[
                    edge_block(2),                      # packed row/col indices
                    edge_block(emb),                    # edge_attr tile
                    resident(n_nodes, emb),             # z (resident)
                ] + weight_specs,
                out_specs=out_spec,
            ),
            compiler_params=compiler_params,
        )(idx, edge_attr, z, w1, b1, w2, b2)
    else:
        # Large graph: gather z rows with XLA in HBM, stream gathered tiles.
        zr = jnp.take(z, row, axis=0)
        zc = jnp.take(z, col, axis=0)
        out = pl.pallas_call(
            _edge_mlp_gathered_kernel,
            out_shape=out_shape,
            grid_spec=pl.GridSpec(
                grid=(num_tiles,),
                in_specs=[
                    edge_block(emb),                    # z[row] tile
                    edge_block(emb),                    # z[col] tile
                    edge_block(emb),                    # edge_attr tile
                ] + weight_specs,
                out_specs=out_spec,
            ),
            compiler_params=compiler_params,
        )(zr, zc, edge_attr, w1, b1, w2, b2)

    return out[:e] if e_pad != e else out


def reference(z, edge_index, edge_attr, params):
    w1, b1, w2, b2 = params
    row, col = edge_index[0], edge_index[1]
    zr, zc = z[row], z[col]
    feat = jnp.concatenate([zr, zc, edge_attr, jnp.abs(zr - zc)], axis=1)
    h = jnp.maximum(feat @ w1 + b1, 0.0)
    return h @ w2 + b2


if __name__ == "__main__":
    # Small shapes consistent with the module; enough edges to exercise
    # padding and a multi-step grid.
    emb_dim = 32
    hidden_dim = 32
    num_classes = 8
    num_nodes = 64
    num_edges = 600
    input_dim = 2 * emb_dim + emb_dim + emb_dim   # = 4 * emb_dim

    key = jax.random.PRNGKey(0)
    k_z, k_ea, k_w1, k_b1, k_w2, k_b2, k_ei = jax.random.split(key, 7)

    z = jax.random.normal(k_z, (num_nodes, emb_dim), dtype=jnp.float32)
    edge_attr = jax.random.normal(k_ea, (num_edges, emb_dim), dtype=jnp.float32)
    edge_index = jax.random.randint(k_ei, (2, num_edges), 0, num_nodes,
                                    dtype=jnp.int32)

    # Deterministic synthetic parameters (nn.Linear shapes, stored transposed).
    w1 = jax.random.normal(k_w1, (input_dim, hidden_dim), jnp.float32) * 0.1
    b1 = jax.random.normal(k_b1, (1, hidden_dim), jnp.float32) * 0.1
    w2 = jax.random.normal(k_w2, (hidden_dim, num_classes), jnp.float32) * 0.1
    b2 = jax.random.normal(k_b2, (1, num_classes), jnp.float32) * 0.1
    params = (w1, b1, w2, b2)

    ref = reference(z, edge_index, edge_attr, params)

    # Path 1: small-N one-hot gather path (multi-tile grid + padding).
    out = edge_mlp_classifier(z, edge_index, edge_attr, params, tile_edges=256)
    out = jax.block_until_ready(out)
    assert out.shape == (num_edges, num_classes)
    assert jnp.allclose(out, ref, atol=1e-4, rtol=1e-4), "onehot path mismatch"

    # Path 2: large-N fallback (wrapper-side gather), forced via threshold=0.
    out2 = edge_mlp_classifier(z, edge_index, edge_attr, params,
                               tile_edges=256, node_gather_threshold=0)
    out2 = jax.block_until_ready(out2)
    assert jnp.allclose(out2, ref, atol=1e-4, rtol=1e-4), "gather path mismatch"

    print("KERNEL_OK")
</pallas_src>

<mosaic_0001>
module attributes {stable_mosaic.version = 11 : i64} {
  func.func @_edge_mlp_onehot_kernel(%arg0: i32, %arg1: memref<256x2xi32, #tpu.memory_space<vmem>>, %arg2: memref<256x32xf32, #tpu.memory_space<vmem>>, %arg3: memref<64x32xf32, #tpu.memory_space<vmem>>, %arg4: memref<128x32xf32, #tpu.memory_space<vmem>>, %arg5: memref<1x32xf32, #tpu.memory_space<vmem>>, %arg6: memref<32x8xf32, #tpu.memory_space<vmem>>, %arg7: memref<1x8xf32, #tpu.memory_space<vmem>>, %arg8: memref<256x8xf32, #tpu.memory_space<vmem>>) attributes {dimension_semantics = [#tpu.dimension_semantics<parallel>], iteration_bounds = array<i64: 3>, scalar_prefetch = 0 : i64, scratch_operands = 0 : i64, tpu.core_type = #tpu.core_type<tc>, window_params = [{transform_indices = @transform_0, window_bounds = array<i64: 256, 2>}, {transform_indices = @transform_1, window_bounds = array<i64: 256, 32>}, {pipeline_mode = #tpu.pipeline_mode<synchronous>, transform_indices = @transform_2, window_bounds = array<i64: 64, 32>}, {pipeline_mode = #tpu.pipeline_mode<synchronous>, transform_indices = @transform_3, window_bounds = array<i64: 128, 32>}, {pipeline_mode = #tpu.pipeline_mode<synchronous>, transform_indices = @transform_4, window_bounds = array<i64: 1, 32>}, {pipeline_mode = #tpu.pipeline_mode<synchronous>, transform_indices = @transform_5, window_bounds = array<i64: 32, 8>}, {pipeline_mode = #tpu.pipeline_mode<synchronous>, transform_indices = @transform_6, window_bounds = array<i64: 1, 8>}, {transform_indices = @transform_7, window_bounds = array<i64: 256, 8>}]} {
    %c0 = arith.constant 0 : index
    %c0_0 = arith.constant 0 : index
    %0 = vector.load %arg1[%c0, %c0_0] : memref<256x2xi32, #tpu.memory_space<vmem>>, vector<256x1xi32>
    %c0_1 = arith.constant 0 : index
    %c1 = arith.constant 1 : index
    %1 = vector.load %arg1[%c0_1, %c1] : memref<256x2xi32, #tpu.memory_space<vmem>>, vector<256x1xi32>
    %2 = tpu.concatenate %0, %1 in 0 : vector<256x1xi32>, vector<256x1xi32> -> vector<512x1xi32>
    %3 = tpu.iota {dimensions = array<i32: 1>} : vector<512x64xi32>
    %4 = vector.broadcast %2 : vector<512x1xi32> to vector<512x64xi32>
    %5 = arith.cmpi eq, %3, %4 : vector<512x64xi32>
    %6 = arith.extui %5 : vector<512x64xi1> to vector<512x64xi32>
    %7 = arith.sitofp %6 : vector<512x64xi32> to vector<512x64xf32>
    %c0_2 = arith.constant 0 : index
    %c0_3 = arith.constant 0 : index
    %8 = vector.load %arg3[%c0_2, %c0_3] : memref<64x32xf32, #tpu.memory_space<vmem>>, vector<64x32xf32>
    %cst = arith.constant dense<0.000000e+00> : vector<512x32xf32>
    %9 = tpu.matmul %7, %8, %cst {dimension_numbers = #tpu.dot_dimension_numbers<[1], [0], [0], [1], [0, 0, 1, 1], [], []>} : vector<512x64xf32>, vector<64x32xf32>, vector<512x32xf32> -> vector<512x32xf32>
    %10 = vector.extract_strided_slice %9 {offsets = [0, 0], sizes = [256, 32], strides = [1, 1]} : vector<512x32xf32> to vector<256x32xf32>
    %11 = vector.extract_strided_slice %9 {offsets = [256, 0], sizes = [256, 32], strides = [1, 1]} : vector<512x32xf32> to vector<256x32xf32>
    %c0_4 = arith.constant 0 : index
    %c0_5 = arith.constant 0 : index
    %12 = vector.load %arg2[%c0_4, %c0_5] : memref<256x32xf32, #tpu.memory_space<vmem>>, vector<256x32xf32>
    %13 = arith.subf %10, %11 : vector<256x32xf32>
    %14 = math.absf %13 : vector<256x32xf32>
    %15 = tpu.concatenate %10, %11, %12, %14 in 1 : vector<256x32xf32>, vector<256x32xf32>, vector<256x32xf32>, vector<256x32xf32> -> vector<256x128xf32>
    %c0_6 = arith.constant 0 : index
    %c0_7 = arith.constant 0 : index
    %16 = vector.load %arg4[%c0_6, %c0_7] : memref<128x32xf32, #tpu.memory_space<vmem>>, vector<128x32xf32>
    %cst_8 = arith.constant dense<0.000000e+00> : vector<256x32xf32>
    %17 = tpu.matmul %15, %16, %cst_8 {dimension_numbers = #tpu.dot_dimension_numbers<[1], [0], [0], [1], [0, 0, 1, 1], [], []>} : vector<256x128xf32>, vector<128x32xf32>, vector<256x32xf32> -> vector<256x32xf32>
    %c0_9 = arith.constant 0 : index
    %c0_10 = arith.constant 0 : index
    %18 = vector.load %arg5[%c0_9, %c0_10] : memref<1x32xf32, #tpu.memory_space<vmem>>, vector<1x32xf32>
    %19 = vector.broadcast %18 : vector<1x32xf32> to vector<256x32xf32>
    %20 = arith.addf %17, %19 : vector<256x32xf32>
    %cst_11 = arith.constant 0.000000e+00 : f32
    %21 = vector.broadcast %cst_11 : f32 to vector<256x32xf32>
    %22 = arith.maximumf %20, %21 : vector<256x32xf32>
    %c0_12 = arith.constant 0 : index
    %c0_13 = arith.constant 0 : index
    %23 = vector.load %arg6[%c0_12, %c0_13] : memref<32x8xf32, #tpu.memory_space<vmem>>, vector<32x8xf32>
    %cst_14 = arith.constant dense<0.000000e+00> : vector<256x8xf32>
    %24 = tpu.matmul %22, %23, %cst_14 {dimension_numbers = #tpu.dot_dimension_numbers<[1], [0], [0], [1], [0, 0, 1, 1], [], []>} : vector<256x32xf32>, vector<32x8xf32>, vector<256x8xf32> -> vector<256x8xf32>
    %c0_15 = arith.constant 0 : index
    %c0_16 = arith.constant 0 : index
    %25 = vector.load %arg7[%c0_15, %c0_16] : memref<1x8xf32, #tpu.memory_space<vmem>>, vector<1x8xf32>
    %26 = vector.broadcast %25 : vector<1x8xf32> to vector<256x8xf32>
    %27 = arith.addf %24, %26 : vector<256x8xf32>
    %c0_17 = arith.constant 0 : index
    %c0_18 = arith.constant 0 : index
    %28 = vector.load %arg8[%c0_17, %c0_18] : memref<256x8xf32, #tpu.memory_space<vmem>>, vector<256x8xf32>
    tpu.vector_store %arg8[%c0_17, %c0_18], %27 {strides = array<i32>} : memref<256x8xf32, #tpu.memory_space<vmem>>, vector<256x8xf32>,
    return
  }
  func.func @transform_0(%arg0: i32) -> (i32, i32) {
    %c0_i32 = arith.constant 0 : i32
    %c0_i32_0 = arith.constant 0 : i32
    return %arg0, %c0_i32 : i32, i32
  }
  func.func @transform_1(%arg0: i32) -> (i32, i32) {
    %c0_i32 = arith.constant 0 : i32
    %c0_i32_0 = arith.constant 0 : i32
    return %arg0, %c0_i32 : i32, i32
  }
  func.func @transform_2(%arg0: i32) -> (i32, i32) {
    %c0_i32 = arith.constant 0 : i32
    %c0_i32_0 = arith.constant 0 : i32
    %c0_i32_1 = arith.constant 0 : i32
    return %c0_i32, %c0_i32_0 : i32, i32
  }
  func.func @transform_3(%arg0: i32) -> (i32, i32) {
    %c0_i32 = arith.constant 0 : i32
    %c0_i32_0 = arith.constant 0 : i32
    %c0_i32_1 = arith.constant 0 : i32
    return %c0_i32, %c0_i32_0 : i32, i32
  }
  func.func @transform_4(%arg0: i32) -> (i32, i32) {
    %c0_i32 = arith.constant 0 : i32
    %c0_i32_0 = arith.constant 0 : i32
    %c0_i32_1 = arith.constant 0 : i32
    return %c0_i32, %c0_i32_0 : i32, i32
  }
  func.func @transform_5(%arg0: i32) -> (i32, i32) {
    %c0_i32 = arith.constant 0 : i32
    %c0_i32_0 = arith.constant 0 : i32
    %c0_i32_1 = arith.constant 0 : i32
    return %c0_i32, %c0_i32_0 : i32, i32
  }
  func.func @transform_6(%arg0: i32) -> (i32, i32) {
    %c0_i32 = arith.constant 0 : i32
    %c0_i32_0 = arith.constant 0 : i32
    %c0_i32_1 = arith.constant 0 : i32
    return %c0_i32, %c0_i32_0 : i32, i32
  }
  func.func @transform_7(%arg0: i32) -> (i32, i32) {
    %c0_i32 = arith.constant 0 : i32
    %c0_i32_0 = arith.constant 0 : i32
    return %arg0, %c0_i32 : i32, i32
  }
}

</mosaic_0001>

<llo_original>
// kernel: tpu_custom_call.1
$region0: #{tpu_custom_call.1}
  #allocation0 [shape = 'u32[]', space=smem, size = 0x4, offset = 0x4, fixed_abs, tag = 'smem constant byte address 0x4 - core index']
  #allocation1 [shape = 'u32[144,128]{1,0:T(1,128)}', space=vmem, size = 0x12000, scoped, tag = 'internal scratch']
  %s0 = inlined_call_operand.vmem [shape: s32[768,2], index: 0, kind: input, shape index: {}]
  %s1 = inlined_call_operand.vmem [shape: f32[768,32], index: 1, kind: input, shape index: {}]
  %s2 = inlined_call_operand.vmem [shape: f32[64,32], index: 2, kind: input, shape index: {}]
  %s3 = inlined_call_operand.vmem [shape: f32[128,32], index: 3, kind: input, shape index: {}]
  %s4 = inlined_call_operand.vmem [shape: f32[1,32], index: 4, kind: input, shape index: {}]
  %s5 = inlined_call_operand.vmem [shape: f32[32,8], index: 5, kind: input, shape index: {}]
  %s6 = inlined_call_operand.vmem [shape: f32[1,8], index: 6, kind: input, shape index: {}]
  %s7 = inlined_call_operand.vmem [shape: f32[768,8], index: 7, kind: output, shape index: {}]
  %s8 = sld [smem:[#allocation0]]
  $region61: #{tpu_custom_call.1} parent=0
    _
  %s10 = ssub.s32 1, %s8
  %s11 = scalar_select 0, %s10, %s8
  loop: start=0, step=1, limit=5
  $region2: #{tpu_custom_call.1} parent=0 // loop_pre_header
    _
  $region3: #{tpu_custom_call.1} parent=0 // loop_header
    %s13 = sphi 0, %s17
    %p14 = scmp.ge.s32.totalorder %s13, 5
    %s23 = sphi 0, %s25
    %s26 = sphi 0, %s23
    %s27 = sphi 0, %s26
    %s43 = sphi 0, %s27
    %s49 = sphi 0, %s51
    %s52 = sphi 0, %s49
    %s53 = sphi 0, %s52
    %s69 = sphi 0, %s53
    %s73 = sphi 0, %s73
    %s75 = sphi 0, %s73
    %s76 = sphi 0, %s75
    %s90 = sphi 0, %s76
    %s94 = sphi 0, %s94
    %s96 = sphi 0, %s94
    %s97 = sphi 0, %s96
    %s111 = sphi 0, %s97
    %s115 = sphi 0, %s115
    %s117 = sphi 0, %s115
    %s118 = sphi 0, %s117
    %s132 = sphi 0, %s118
    %s136 = sphi 0, %s136
    %s138 = sphi 0, %s136
    %s139 = sphi 0, %s138
    %s153 = sphi 0, %s139
    %s157 = sphi 0, %s157
    %s159 = sphi 0, %s157
    %s160 = sphi 0, %s159
    %s174 = sphi 0, %s160
    %s180 = sphi 0, %s182
    %s183 = sphi 0, %s180
    %s184 = sphi 0, %s183
    %s200 = sphi 0, %s184
  $region4: #{tpu_custom_call.1} parent=0 // loop_header_branch
    %16 = sbr.rel (%p14) target = $region8
  $region5: #{tpu_custom_call.1} parent=0 // loop_body
    %s18 = ssub.s32 %s13, 1
    %s19 = ssub.s32 %s13, 2
    %s20 = sadd.s32 %s13, 1
    %s21 = ssub.s32 %s13, %s20
    %p22 = scmp.eq.s32.totalorder %s21, 0
    %s24 = sadd.s32 %s23, 1
    %s25 = scalar_select %p22, %s23, %s24
    %p28 = pneg %p22
    %p29 = scmp.eq.s32.totalorder %s13, 2
    %p30 = por %p28, %p29
    %p31 = scmp.ne.s32.totalorder %s23, %s26
    %p32 = scmp.eq.s32.totalorder %s13, 0
    %p33 = por %p31, %p32
    %p34 = scmp.ne.s32.totalorder %s23, %s26
    %p35 = scmp.eq.s32.totalorder %s18, 2
    %p36 = por %p34, %p35
    %p37 = scmp.ne.s32.totalorder %s26, %s27
    %p38 = scmp.eq.s32.totalorder %s18, 0
    %p39 = por %p37, %p38
    %p40 = scmp.ne.s32.totalorder %s26, %s27
    %p41 = scmp.eq.s32.totalorder %s19, 2
    %p42 = por %p40, %p41
    %p44 = scmp.ne.s32.totalorder %s27, %s43
    %p45 = scmp.eq.s32.totalorder %s19, 0
    %p46 = por %p44, %p45
    %s47 = ssub.s32 %s13, %s20
    %p48 = scmp.eq.s32.totalorder %s47, 0
    %s50 = sadd.s32 %s49, 1
    %s51 = scalar_select %p48, %s49, %s50
    %p54 = pneg %p48
    %p55 = scmp.eq.s32.totalorder %s13, 2
    %p56 = por %p54, %p55
    %p57 = scmp.ne.s32.totalorder %s49, %s52
    %p58 = scmp.eq.s32.totalorder %s13, 0
    %p59 = por %p57, %p58
    %p60 = scmp.ne.s32.totalorder %s49, %s52
    %p61 = scmp.eq.s32.totalorder %s18, 2
    %p62 = por %p60, %p61
    %p63 = scmp.ne.s32.totalorder %s52, %s53
    %p64 = scmp.eq.s32.totalorder %s18, 0
    %p65 = por %p63, %p64
    %p66 = scmp.ne.s32.totalorder %s52, %s53
    %p67 = scmp.eq.s32.totalorder %s19, 2
    %p68 = por %p66, %p67
    %p70 = scmp.ne.s32.totalorder %s53, %s69
    %p71 = scmp.eq.s32.totalorder %s19, 0
    %p72 = por %p70, %p71
    %s74 = sadd.s32 %s73, 1
    %p77 = scmp.eq.s32.totalorder %s13, 2
    %p78 = scmp.ne.s32.totalorder %s73, %s75
    %p79 = scmp.eq.s32.totalorder %s13, 0
    %p80 = por %p78, %p79
    %p81 = scmp.ne.s32.totalorder %s73, %s75
    %p82 = scmp.eq.s32.totalorder %s18, 2
    %p83 = por %p81, %p82
    %p84 = scmp.ne.s32.totalorder %s75, %s76
    %p85 = scmp.eq.s32.totalorder %s18, 0
    %p86 = por %p84, %p85
    %p87 = scmp.ne.s32.totalorder %s75, %s76
    %p88 = scmp.eq.s32.totalorder %s19, 2
    %p89 = por %p87, %p88
    %p91 = scmp.ne.s32.totalorder %s76, %s90
    %p92 = scmp.eq.s32.totalorder %s19, 0
    %p93 = por %p91, %p92
    %s95 = sadd.s32 %s94, 1
    %p98 = scmp.eq.s32.totalorder %s13, 2
    %p99 = scmp.ne.s32.totalorder %s94, %s96
    %p100 = scmp.eq.s32.totalorder %s13, 0
    %p101 = por %p99, %p100
    %p102 = scmp.ne.s32.totalorder %s94, %s96
    %p103 = scmp.eq.s32.totalorder %s18, 2
    %p104 = por %p102, %p103
    %p105 = scmp.ne.s32.totalorder %s96, %s97
    %p106 = scmp.eq.s32.totalorder %s18, 0
    %p107 = por %p105, %p106
    %p108 = scmp.ne.s32.totalorder %s96, %s97
    %p109 = scmp.eq.s32.totalorder %s19, 2
    %p110 = por %p108, %p109
    %p112 = scmp.ne.s32.totalorder %s97, %s111
    %p113 = scmp.eq.s32.totalorder %s19, 0
    %p114 = por %p112, %p113
    %s116 = sadd.s32 %s115, 1
    %p119 = scmp.eq.s32.totalorder %s13, 2
    %p120 = scmp.ne.s32.totalorder %s115, %s117
    %p121 = scmp.eq.s32.totalorder %s13, 0
    %p122 = por %p120, %p121
    %p123 = scmp.ne.s32.totalorder %s115, %s117
    %p124 = scmp.eq.s32.totalorder %s18, 2
    %p125 = por %p123, %p124
    %p126 = scmp.ne.s32.totalorder %s117, %s118
    %p127 = scmp.eq.s32.totalorder %s18, 0
    %p128 = por %p126, %p127
    %p129 = scmp.ne.s32.totalorder %s117, %s118
    %p130 = scmp.eq.s32.totalorder %s19, 2
    %p131 = por %p129, %p130
    %p133 = scmp.ne.s32.totalorder %s118, %s132
    %p134 = scmp.eq.s32.totalorder %s19, 0
    %p135 = por %p133, %p134
    %s137 = sadd.s32 %s136, 1
    %p140 = scmp.eq.s32.totalorder %s13, 2
    %p141 = scmp.ne.s32.totalorder %s136, %s138
    %p142 = scmp.eq.s32.totalorder %s13, 0
    %p143 = por %p141, %p142
    %p144 = scmp.ne.s32.totalorder %s136, %s138
    %p145 = scmp.eq.s32.totalorder %s18, 2
    %p146 = por %p144, %p145
    %p147 = scmp.ne.s32.totalorder %s138, %s139
    %p148 = scmp.eq.s32.totalorder %s18, 0
    %p149 = por %p147, %p148
    %p150 = scmp.ne.s32.totalorder %s138, %s139
    %p151 = scmp.eq.s32.totalorder %s19, 2
    %p152 = por %p150, %p151
    %p154 = scmp.ne.s32.totalorder %s139, %s153
    %p155 = scmp.eq.s32.totalorder %s19, 0
    %p156 = por %p154, %p155
    %s158 = sadd.s32 %s157, 1
    %p161 = scmp.eq.s32.totalorder %s13, 2
    %p162 = scmp.ne.s32.totalorder %s157, %s159
    %p163 = scmp.eq.s32.totalorder %s13, 0
    %p164 = por %p162, %p163
    %p165 = scmp.ne.s32.totalorder %s157, %s159
    %p166 = scmp.eq.s32.totalorder %s18, 2
    %p167 = por %p165, %p166
    %p168 = scmp.ne.s32.totalorder %s159, %s160
    %p169 = scmp.eq.s32.totalorder %s18, 0
    %p170 = por %p168, %p169
    %p171 = scmp.ne.s32.totalorder %s159, %s160
    %p172 = scmp.eq.s32.totalorder %s19, 2
    %p173 = por %p171, %p172
    %p175 = scmp.ne.s32.totalorder %s160, %s174
    %p176 = scmp.eq.s32.totalorder %s19, 0
    %p177 = por %p175, %p176
    %s178 = ssub.s32 %s13, %s20
    %p179 = scmp.eq.s32.totalorder %s178, 0
    %s181 = sadd.s32 %s180, 1
    %s182 = scalar_select %p179, %s180, %s181
    %p185 = pneg %p179
    %p186 = scmp.eq.s32.totalorder %s13, 2
    %p187 = por %p185, %p186
    %p188 = scmp.ne.s32.totalorder %s180, %s183
    %p189 = scmp.eq.s32.totalorder %s13, 0
    %p190 = por %p188, %p189
    %p191 = scmp.ne.s32.totalorder %s180, %s183
    %p192 = scmp.eq.s32.totalorder %s18, 2
    %p193 = por %p191, %p192
    %p194 = scmp.ne.s32.totalorder %s183, %s184
    %p195 = scmp.eq.s32.totalorder %s18, 0
    %p196 = por %p194, %p195
    %p197 = scmp.ne.s32.totalorder %s183, %s184
    %p198 = scmp.eq.s32.totalorder %s19, 2
    %p199 = por %p197, %p198
    %p201 = scmp.ne.s32.totalorder %s184, %s200
    %p202 = scmp.eq.s32.totalorder %s19, 0
    %p203 = por %p201, %p202
    %p204 = scmp.le.s32.totalorder 1, %s13
    %p205 = scmp.lt.s32.totalorder %s13, 4
    %p206 = pnand %p204, %p205
    %p207 = pneg %p206
    // Predicated region
    $region9: #{tpu_custom_call.1} parent=5 // pred_check
      _
    $region10: #{tpu_custom_call.1} parent=5 // pred_check_branch
      %209 = sbr.rel (%p206) target = $region12
    $region11: #{tpu_custom_call.1} parent=5 // pred_region
      %s210 = ssub.s32 %s13, 1
      // Predicated region
      $region13: #{tpu_custom_call.1} parent=11 // pred_check
        %p211 = pneg %p86
      $region14: #{tpu_custom_call.1} parent=11 // pred_check_branch
        %213 = sbr.rel (%p211) target = $region16
      $region15: #{tpu_custom_call.1} parent=11 // pred_region
        _
      $region16: #{tpu_custom_call.1} parent=11 // pred_fallthru
        _
      // Predicated region
      $region17: #{tpu_custom_call.1} parent=11 // pred_check
        %p214 = pneg %p107
      $region18: #{tpu_custom_call.1} parent=11 // pred_check_branch
        %216 = sbr.rel (%p214) target = $region20
      $region19: #{tpu_custom_call.1} parent=11 // pred_region
        _
      $region20: #{tpu_custom_call.1} parent=11 // pred_fallthru
        _
      // Predicated region
      $region21: #{tpu_custom_call.1} parent=11 // pred_check
        %p217 = pneg %p128
      $region22: #{tpu_custom_call.1} parent=11 // pred_check_branch
        %219 = sbr.rel (%p217) target = $region24
      $region23: #{tpu_custom_call.1} parent=11 // pred_region
        _
      $region24: #{tpu_custom_call.1} parent=11 // pred_fallthru
        _
      // Predicated region
      $region25: #{tpu_custom_call.1} parent=11 // pred_check
        %p220 = pneg %p149
      $region26: #{tpu_custom_call.1} parent=11 // pred_check_branch
        %222 = sbr.rel (%p220) target = $region28
      $region27: #{tpu_custom_call.1} parent=11 // pred_region
        _
      $region28: #{tpu_custom_call.1} parent=11 // pred_fallthru
        _
      // Predicated region
      $region29: #{tpu_custom_call.1} parent=11 // pred_check
        %p223 = pneg %p170
      $region30: #{tpu_custom_call.1} parent=11 // pred_check_branch
        %225 = sbr.rel (%p223) target = $region32
      $region31: #{tpu_custom_call.1} parent=11 // pred_region
        _
      $region32: #{tpu_custom_call.1} parent=11 // pred_fallthru
        _
    $region12: #{tpu_custom_call.1} parent=5 // pred_fallthru
      _
    %p226 = scmp.lt.s32.totalorder %s13, 3
    // Predicated region
    $region33: #{tpu_custom_call.1} parent=5 // pred_check
      %p227 = pneg %p226
    $region34: #{tpu_custom_call.1} parent=5 // pred_check_branch
      %229 = sbr.rel (%p227) target = $region36
    $region35: #{tpu_custom_call.1} parent=5 // pred_region
      // Predicated region
      $region37: #{tpu_custom_call.1} parent=35 // pred_check
        %p230 = pneg %p33
      $region38: #{tpu_custom_call.1} parent=35 // pred_check_branch
        %232 = sbr.rel (%p230) target = $region40
      $region39: #{tpu_custom_call.1} parent=35 // pred_region
        %s233 = smul.u32 32, %s13
        %p234 = scmp.lt.s32.totalorder %s233, 95
        %s235 = scalar_select %p234, %s233, 95
        %s236 = smul.addr %s235, 8
        %s237 = scalar_lea.vmem %s0, %s236
        %s238 = smul.u32 32, %s13
      $region40: #{tpu_custom_call.1} parent=35 // pred_fallthru
        _
      // Predicated region
      $region41: #{tpu_custom_call.1} parent=35 // pred_check
        %p239 = pneg %p59
      $region42: #{tpu_custom_call.1} parent=35 // pred_check_branch
        %241 = sbr.rel (%p239) target = $region44
      $region43: #{tpu_custom_call.1} parent=35 // pred_region
        %s242 = smul.u32 32, %s13
        %p243 = scmp.lt.s32.totalorder %s242, 95
        %s244 = scalar_select %p243, %s242, 95
        %s245 = smul.addr %s244, 8
        %s246 = scalar_lea.vmem %s1, %s245
        %s247 = smul.u32 32, %s13
      $region44: #{tpu_custom_call.1} parent=35 // pred_fallthru
        _
    $region36: #{tpu_custom_call.1} parent=5 // pred_fallthru
      _
    %p248 = scmp.le.s32.totalorder 1, %s13
    %p249 = scmp.lt.s32.totalorder %s13, 4
    %p250 = pnand %p248, %p249
    %p251 = pneg %p250
    // Predicated region
    $region45: #{tpu_custom_call.1} parent=5 // pred_check
      _
    $region46: #{tpu_custom_call.1} parent=5 // pred_check_branch
      %253 = sbr.rel (%p250) target = $region48
    $region47: #{tpu_custom_call.1} parent=5 // pred_region
      %s254 = ssub.s32 %s13, 1
      %s255 = smul.u32 32, %s18
      %p256 = scmp.lt.s32.totalorder %s255, 95
      %s257 = scalar_select %p256, %s255, 95
      %s258 = smul.addr %s257, 8
      %s259 = scalar_lea.vmem %s0, %s258
      %p260 = pneg %p39
      %p261 = pneg %p36
      %s262 = smul.u32 32, %s18
      %p263 = scmp.lt.s32.totalorder %s262, 95
      %s264 = scalar_select %p263, %s262, 95
      %s265 = smul.addr %s264, 8
      %s266 = scalar_lea.vmem %s1, %s265
      %p267 = pneg %p65
      %p268 = pneg %p62
      %p269 = pneg %p86
      %p270 = pneg %p83
      %p271 = pneg %p107
      %p272 = pneg %p104
      %p273 = pneg %p128
      %p274 = pneg %p125
      %p275 = pneg %p149
      %p276 = pneg %p146
      %p277 = pneg %p170
      %p278 = pneg %p167
      %p279 = pneg %p196
      %p280 = pneg %p193
      %s281 = smul.u32 32, %s18
      %p282 = scmp.lt.s32.totalorder %s281, 95
      %s283 = scalar_select %p282, %s281, 95
      %s284 = smul.addr %s283, 8
      %s285 = scalar_lea.vmem %s7, %s284
      %s286 = smul.u32 32, %s18
      %p287 = scmp.lt.s32.totalorder %s286, 95
      %s288 = scalar_select %p287, %s286, 95
      %s289 = smul.addr %s288, 8
      %s290 = scalar_lea.vmem %s0, %s289
      %s291 = smul.u32 32, %s18
      %s292 = smul.u32 32, %s18
      %p293 = scmp.lt.s32.totalorder %s292, 95
      %s294 = scalar_select %p293, %s292, 95
      %s295 = smul.addr %s294, 8
      %s296 = scalar_lea.vmem %s1, %s295
      %s297 = smul.u32 32, %s18
      %s298 = smul.u32 32, %s18
      %p299 = scmp.lt.s32.totalorder %s298, 95
      %s300 = scalar_select %p299, %s298, 95
      %s301 = smul.addr %s300, 8
      %s302 = scalar_lea.vmem %s7, %s301
      %s303 = smul.u32 32, %s18
      %v304 = vld [vmem:[%s290] sm:$0xff]
      %v305 = vld [vmem:[%s290 + $0x8] sm:$0xff]
      %v306 = vld [vmem:[%s290 + $0x10] sm:$0xff]
      %v307 = vld [vmem:[%s290 + $0x18] sm:$0xff]
      %v308 = vld [vmem:[%s290 + $0x20] sm:$0xff]
      %v309 = vld [vmem:[%s290 + $0x28] sm:$0xff]
      %v310 = vld [vmem:[%s290 + $0x30] sm:$0xff]
      %v311 = vld [vmem:[%s290 + $0x38] sm:$0xff]
      %v312 = vld [vmem:[%s290 + $0x40] sm:$0xff]
      %v313 = vld [vmem:[%s290 + $0x48] sm:$0xff]
      %v314 = vld [vmem:[%s290 + $0x50] sm:$0xff]
      %v315 = vld [vmem:[%s290 + $0x58] sm:$0xff]
      %v316 = vld [vmem:[%s290 + $0x60] sm:$0xff]
      %v317 = vld [vmem:[%s290 + $0x68] sm:$0xff]
      %v318 = vld [vmem:[%s290 + $0x70] sm:$0xff]
      %v319 = vld [vmem:[%s290 + $0x78] sm:$0xff]
      %v320 = vld [vmem:[%s290 + $0x80] sm:$0xff]
      %v321 = vld [vmem:[%s290 + $0x88] sm:$0xff]
      %v322 = vld [vmem:[%s290 + $0x90] sm:$0xff]
      %v323 = vld [vmem:[%s290 + $0x98] sm:$0xff]
      %v324 = vld [vmem:[%s290 + $0xa0] sm:$0xff]
      %v325 = vld [vmem:[%s290 + $0xa8] sm:$0xff]
      %v326 = vld [vmem:[%s290 + $0xb0] sm:$0xff]
      %v327 = vld [vmem:[%s290 + $0xb8] sm:$0xff]
      %v328 = vld [vmem:[%s290 + $0xc0] sm:$0xff]
      %v329 = vld [vmem:[%s290 + $0xc8] sm:$0xff]
      %v330 = vld [vmem:[%s290 + $0xd0] sm:$0xff]
      %v331 = vld [vmem:[%s290 + $0xd8] sm:$0xff]
      %v332 = vld [vmem:[%s290 + $0xe0] sm:$0xff]
      %v333 = vld [vmem:[%s290 + $0xe8] sm:$0xff]
      %v334 = vld [vmem:[%s290 + $0xf0] sm:$0xff]
      %v335 = vld [vmem:[%s290 + $0xf8] sm:$0xff]
      %336 = vrot.lane.b32.xlu0 %v304, 127
      %v337 = vpop.permute.xlu0 %336
      %338 = vrot.lane.b32.xlu0 %v305, 127
      %v339 = vpop.permute.xlu0 %338
      %340 = vrot.lane.b32.xlu0 %v306, 127
      %v341 = vpop.permute.xlu0 %340
      %342 = vrot.lane.b32.xlu0 %v307, 127
      %v343 = vpop.permute.xlu0 %342
      %344 = vrot.lane.b32.xlu0 %v308, 127
      %v345 = vpop.permute.xlu0 %344
      %346 = vrot.lane.b32.xlu0 %v309, 127
      %v347 = vpop.permute.xlu0 %346
      %348 = vrot.lane.b32.xlu0 %v310, 127
      %v349 = vpop.permute.xlu0 %348
      %350 = vrot.lane.b32.xlu0 %v311, 127
      %v351 = vpop.permute.xlu0 %350
      %352 = vrot.lane.b32.xlu0 %v312, 127
      %v353 = vpop.permute.xlu0 %352
      %354 = vrot.lane.b32.xlu0 %v313, 127
      %v355 = vpop.permute.xlu0 %354
      %356 = vrot.lane.b32.xlu0 %v314, 127
      %v357 = vpop.permute.xlu0 %356
      %358 = vrot.lane.b32.xlu0 %v315, 127
      %v359 = vpop.permute.xlu0 %358
      %360 = vrot.lane.b32.xlu0 %v316, 127
      %v361 = vpop.permute.xlu0 %360
      %362 = vrot.lane.b32.xlu0 %v317, 127
      %v363 = vpop.permute.xlu0 %362
      %364 = vrot.lane.b32.xlu0 %v318, 127
      %v365 = vpop.permute.xlu0 %364
      %366 = vrot.lane.b32.xlu0 %v319, 127
      %v367 = vpop.permute.xlu0 %366
      %368 = vrot.lane.b32.xlu0 %v320, 127
      %v369 = vpop.permute.xlu0 %368
      %370 = vrot.lane.b32.xlu0 %v321, 127
      %v371 = vpop.permute.xlu0 %370
      %372 = vrot.lane.b32.xlu0 %v322, 127
      %v373 = vpop.permute.xlu0 %372
      %374 = vrot.lane.b32.xlu0 %v323, 127
      %v375 = vpop.permute.xlu0 %374
      %376 = vrot.lane.b32.xlu0 %v324, 127
      %v377 = vpop.permute.xlu0 %376
      %378 = vrot.lane.b32.xlu0 %v325, 127
      %v379 = vpop.permute.xlu0 %378
      %380 = vrot.lane.b32.xlu0 %v326, 127
      %v381 = vpop.permute.xlu0 %380
      %382 = vrot.lane.b32.xlu0 %v327, 127
      %v383 = vpop.permute.xlu0 %382
      %384 = vrot.lane.b32.xlu0 %v328, 127
      %v385 = vpop.permute.xlu0 %384
      %386 = vrot.lane.b32.xlu0 %v329, 127
      %v387 = vpop.permute.xlu0 %386
      %388 = vrot.lane.b32.xlu0 %v330, 127
      %v389 = vpop.permute.xlu0 %388
      %390 = vrot.lane.b32.xlu0 %v331, 127
      %v391 = vpop.permute.xlu0 %390
      %392 = vrot.lane.b32.xlu0 %v332, 127
      %v393 = vpop.permute.xlu0 %392
      %394 = vrot.lane.b32.xlu0 %v333, 127
      %v395 = vpop.permute.xlu0 %394
      %396 = vrot.lane.b32.xlu0 %v334, 127
      %v397 = vpop.permute.xlu0 %396
      %398 = vrot.lane.b32.xlu0 %v335, 127
      %v399 = vpop.permute.xlu0 %398
      %v400 = vlaneseq
      %v401 = vand.u32 %v400, 127
      %402 = vset.pattern.permute.xlu0 0
      %403 = vperm.xlu0 %402, %v304
      %v404 = vpop.permute.xlu0 %403
      %405 = vset.pattern.permute.xlu0 0
      %406 = vperm.xlu0 %405, %v305
      %v407 = vpop.permute.xlu0 %406
      %408 = vset.pattern.permute.xlu0 0
      %409 = vperm.xlu0 %408, %v306
      %v410 = vpop.permute.xlu0 %409
      %411 = vset.pattern.permute.xlu0 0
      %412 = vperm.xlu0 %411, %v307
      %v413 = vpop.permute.xlu0 %412
      %414 = vset.pattern.permute.xlu0 0
      %415 = vperm.xlu0 %414, %v308
      %v416 = vpop.permute.xlu0 %415
      %417 = vset.pattern.permute.xlu0 0
      %418 = vperm.xlu0 %417, %v309
      %v419 = vpop.permute.xlu0 %418
      %420 = vset.pattern.permute.xlu0 0
      %421 = vperm.xlu0 %420, %v310
      %v422 = vpop.permute.xlu0 %421
      %423 = vset.pattern.permute.xlu0 0
      %424 = vperm.xlu0 %423, %v311
      %v425 = vpop.permute.xlu0 %424
      %426 = vset.pattern.permute.xlu0 0
      %427 = vperm.xlu0 %426, %v312
      %v428 = vpop.permute.xlu0 %427
      %429 = vset.pattern.permute.xlu0 0
      %430 = vperm.xlu0 %429, %v313
      %v431 = vpop.permute.xlu0 %430
      %432 = vset.pattern.permute.xlu0 0
      %433 = vperm.xlu0 %432, %v314
      %v434 = vpop.permute.xlu0 %433
      %435 = vset.pattern.permute.xlu0 0
      %436 = vperm.xlu0 %435, %v315
      %v437 = vpop.permute.xlu0 %436
      %438 = vset.pattern.permute.xlu0 0
      %439 = vperm.xlu0 %438, %v316
      %v440 = vpop.permute.xlu0 %439
      %441 = vset.pattern.permute.xlu0 0
      %442 = vperm.xlu0 %441, %v317
      %v443 = vpop.permute.xlu0 %442
      %444 = vset.pattern.permute.xlu0 0
      %445 = vperm.xlu0 %444, %v318
      %v446 = vpop.permute.xlu0 %445
      %447 = vset.pattern.permute.xlu0 0
      %448 = vperm.xlu0 %447, %v319
      %v449 = vpop.permute.xlu0 %448
      %450 = vset.pattern.permute.xlu0 0
      %451 = vperm.xlu0 %450, %v320
      %v452 = vpop.permute.xlu0 %451
      %453 = vset.pattern.permute.xlu0 0
      %454 = vperm.xlu0 %453, %v321
      %v455 = vpop.permute.xlu0 %454
      %456 = vset.pattern.permute.xlu0 0
      %457 = vperm.xlu0 %456, %v322
      %v458 = vpop.permute.xlu0 %457
      %459 = vset.pattern.permute.xlu0 0
      %460 = vperm.xlu0 %459, %v323
      %v461 = vpop.permute.xlu0 %460
      %462 = vset.pattern.permute.xlu0 0
      %463 = vperm.xlu0 %462, %v324
      %v464 = vpop.permute.xlu0 %463
      %465 = vset.pattern.permute.xlu0 0
      %466 = vperm.xlu0 %465, %v325
      %v467 = vpop.permute.xlu0 %466
      %468 = vset.pattern.permute.xlu0 0
      %469 = vperm.xlu0 %468, %v326
      %v470 = vpop.permute.xlu0 %469
      %471 = vset.pattern.permute.xlu0 0
      %472 = vperm.xlu0 %471, %v327
      %v473 = vpop.permute.xlu0 %472
      %474 = vset.pattern.permute.xlu0 0
      %475 = vperm.xlu0 %474, %v328
      %v476 = vpop.permute.xlu0 %475
      %477 = vset.pattern.permute.xlu0 0
      %478 = vperm.xlu0 %477, %v329
      %v479 = vpop.permute.xlu0 %478
      %480 = vset.pattern.permute.xlu0 0
      %481 = vperm.xlu0 %480, %v330
      %v482 = vpop.permute.xlu0 %481
      %483 = vset.pattern.permute.xlu0 0
      %484 = vperm.xlu0 %483, %v331
      %v485 = vpop.permute.xlu0 %484
      %486 = vset.pattern.permute.xlu0 0
      %487 = vperm.xlu0 %486, %v332
      %v488 = vpop.permute.xlu0 %487
      %489 = vset.pattern.permute.xlu0 0
      %490 = vperm.xlu0 %489, %v333
      %v491 = vpop.permute.xlu0 %490
      %492 = vset.pattern.permute.xlu0 0
      %493 = vperm.xlu0 %492, %v334
      %v494 = vpop.permute.xlu0 %493
      %495 = vset.pattern.permute.xlu0 0
      %496 = vperm.xlu0 %495, %v335
      %v497 = vpop.permute.xlu0 %496
      %498 = vset.pattern.permute.xlu0 0
      %499 = vperm.xlu0 %498, %v337
      %v500 = vpop.permute.xlu0 %499
      %501 = vset.pattern.permute.xlu0 0
      %502 = vperm.xlu0 %501, %v339
      %v503 = vpop.permute.xlu0 %502
      %504 = vset.pattern.permute.xlu0 0
      %505 = vperm.xlu0 %504, %v341
      %v506 = vpop.permute.xlu0 %505
      %507 = vset.pattern.permute.xlu0 0
      %508 = vperm.xlu0 %507, %v343
      %v509 = vpop.permute.xlu0 %508
      %510 = vset.pattern.permute.xlu0 0
      %511 = vperm.xlu0 %510, %v345
      %v512 = vpop.permute.xlu0 %511
      %513 = vset.pattern.permute.xlu0 0
      %514 = vperm.xlu0 %513, %v347
      %v515 = vpop.permute.xlu0 %514
      %516 = vset.pattern.permute.xlu0 0
      %517 = vperm.xlu0 %516, %v349
      %v518 = vpop.permute.xlu0 %517
      %519 = vset.pattern.permute.xlu0 0
      %520 = vperm.xlu0 %519, %v351
      %v521 = vpop.permute.xlu0 %520
      %522 = vset.pattern.permute.xlu0 0
      %523 = vperm.xlu0 %522, %v353
      %v524 = vpop.permute.xlu0 %523
      %525 = vset.pattern.permute.xlu0 0
      %526 = vperm.xlu0 %525, %v355
      %v527 = vpop.permute.xlu0 %526
      %528 = vset.pattern.permute.xlu0 0
      %529 = vperm.xlu0 %528, %v357
      %v530 = vpop.permute.xlu0 %529
      %531 = vset.pattern.permute.xlu0 0
      %532 = vperm.xlu0 %531, %v359
      %v533 = vpop.permute.xlu0 %532
      %534 = vset.pattern.permute.xlu0 0
      %535 = vperm.xlu0 %534, %v361
      %v536 = vpop.permute.xlu0 %535
      %537 = vset.pattern.permute.xlu0 0
      %538 = vperm.xlu0 %537, %v363
      %v539 = vpop.permute.xlu0 %538
      %540 = vset.pattern.permute.xlu0 0
      %541 = vperm.xlu0 %540, %v365
      %v542 = vpop.permute.xlu0 %541
      %543 = vset.pattern.permute.xlu0 0
      %544 = vperm.xlu0 %543, %v367
      %v545 = vpop.permute.xlu0 %544
      %546 = vset.pattern.permute.xlu0 0
      %547 = vperm.xlu0 %546, %v369
      %v548 = vpop.permute.xlu0 %547
      %549 = vset.pattern.permute.xlu0 0
      %550 = vperm.xlu0 %549, %v371
      %v551 = vpop.permute.xlu0 %550
      %552 = vset.pattern.permute.xlu0 0
      %553 = vperm.xlu0 %552, %v373
      %v554 = vpop.permute.xlu0 %553
      %555 = vset.pattern.permute.xlu0 0
      %556 = vperm.xlu0 %555, %v375
      %v557 = vpop.permute.xlu0 %556
      %558 = vset.pattern.permute.xlu0 0
      %559 = vperm.xlu0 %558, %v377
      %v560 = vpop.permute.xlu0 %559
      %561 = vset.pattern.permute.xlu0 0
      %562 = vperm.xlu0 %561, %v379
      %v563 = vpop.permute.xlu0 %562
      %564 = vset.pattern.permute.xlu0 0
      %565 = vperm.xlu0 %564, %v381
      %v566 = vpop.permute.xlu0 %565
      %567 = vset.pattern.permute.xlu0 0
      %568 = vperm.xlu0 %567, %v383
      %v569 = vpop.permute.xlu0 %568
      %570 = vset.pattern.permute.xlu0 0
      %571 = vperm.xlu0 %570, %v385
      %v572 = vpop.permute.xlu0 %571
      %573 = vset.pattern.permute.xlu0 0
      %574 = vperm.xlu0 %573, %v387
      %v575 = vpop.permute.xlu0 %574
      %576 = vset.pattern.permute.xlu0 0
      %577 = vperm.xlu0 %576, %v389
      %v578 = vpop.permute.xlu0 %577
      %579 = vset.pattern.permute.xlu0 0
      %580 = vperm.xlu0 %579, %v391
      %v581 = vpop.permute.xlu0 %580
      %582 = vset.pattern.permute.xlu0 0
      %583 = vperm.xlu0 %582, %v393
      %v584 = vpop.permute.xlu0 %583
      %585 = vset.pattern.permute.xlu0 0
      %586 = vperm.xlu0 %585, %v395
      %v587 = vpop.permute.xlu0 %586
      %588 = vset.pattern.permute.xlu0 0
      %589 = vperm.xlu0 %588, %v397
      %v590 = vpop.permute.xlu0 %589
      %591 = vset.pattern.permute.xlu0 0
      %592 = vperm.xlu0 %591, %v399
      %v593 = vpop.permute.xlu0 %592
      %vm594 = vcmp.eq.s32.totalorder %v401, %v404
      %vm595 = vcmp.eq.s32.totalorder %v401, %v407
      %vm596 = vcmp.eq.s32.totalorder %v401, %v410
      %vm597 = vcmp.eq.s32.totalorder %v401, %v413
      %vm598 = vcmp.eq.s32.totalorder %v401, %v416
      %vm599 = vcmp.eq.s32.totalorder %v401, %v419
      %vm600 = vcmp.eq.s32.totalorder %v401, %v422
      %vm601 = vcmp.eq.s32.totalorder %v401, %v425
      %vm602 = vcmp.eq.s32.totalorder %v401, %v428
      %vm603 = vcmp.eq.s32.totalorder %v401, %v431
      %vm604 = vcmp.eq.s32.totalorder %v401, %v434
      %vm605 = vcmp.eq.s32.totalorder %v401, %v437
      %vm606 = vcmp.eq.s32.totalorder %v401, %v440
      %vm607 = vcmp.eq.s32.totalorder %v401, %v443
      %vm608 = vcmp.eq.s32.totalorder %v401, %v446
      %vm609 = vcmp.eq.s32.totalorder %v401, %v449
      %vm610 = vcmp.eq.s32.totalorder %v401, %v452
      %vm611 = vcmp.eq.s32.totalorder %v401, %v455
      %vm612 = vcmp.eq.s32.totalorder %v401, %v458
      %vm613 = vcmp.eq.s32.totalorder %v401, %v461
      %vm614 = vcmp.eq.s32.totalorder %v401, %v464
      %vm615 = vcmp.eq.s32.totalorder %v401, %v467
      %vm616 = vcmp.eq.s32.totalorder %v401, %v470
      %vm617 = vcmp.eq.s32.totalorder %v401, %v473
      %vm618 = vcmp.eq.s32.totalorder %v401, %v476
      %vm619 = vcmp.eq.s32.totalorder %v401, %v479
      %vm620 = vcmp.eq.s32.totalorder %v401, %v482
      %vm621 = vcmp.eq.s32.totalorder %v401, %v485
      %vm622 = vcmp.eq.s32.totalorder %v401, %v488
      %vm623 = vcmp.eq.s32.totalorder %v401, %v491
      %vm624 = vcmp.eq.s32.totalorder %v401, %v494
      %vm625 = vcmp.eq.s32.totalorder %v401, %v497
      %vm626 = vcmp.eq.s32.totalorder %v401, %v500
      %vm627 = vcmp.eq.s32.totalorder %v401, %v503
      %vm628 = vcmp.eq.s32.totalorder %v401, %v506
      %vm629 = vcmp.eq.s32.totalorder %v401, %v509
      %vm630 = vcmp.eq.s32.totalorder %v401, %v512
      %vm631 = vcmp.eq.s32.totalorder %v401, %v515
      %vm632 = vcmp.eq.s32.totalorder %v401, %v518
      %vm633 = vcmp.eq.s32.totalorder %v401, %v521
      %vm634 = vcmp.eq.s32.totalorder %v401, %v524
      %vm635 = vcmp.eq.s32.totalorder %v401, %v527
      %vm636 = vcmp.eq.s32.totalorder %v401, %v530
      %vm637 = vcmp.eq.s32.totalorder %v401, %v533
      %vm638 = vcmp.eq.s32.totalorder %v401, %v536
      %vm639 = vcmp.eq.s32.totalorder %v401, %v539
      %vm640 = vcmp.eq.s32.totalorder %v401, %v542
      %vm641 = vcmp.eq.s32.totalorder %v401, %v545
      %vm642 = vcmp.eq.s32.totalorder %v401, %v548
      %vm643 = vcmp.eq.s32.totalorder %v401, %v551
      %vm644 = vcmp.eq.s32.totalorder %v401, %v554
      %vm645 = vcmp.eq.s32.totalorder %v401, %v557
      %vm646 = vcmp.eq.s32.totalorder %v401, %v560
      %vm647 = vcmp.eq.s32.totalorder %v401, %v563
      %vm648 = vcmp.eq.s32.totalorder %v401, %v566
      %vm649 = vcmp.eq.s32.totalorder %v401, %v569
      %vm650 = vcmp.eq.s32.totalorder %v401, %v572
      %vm651 = vcmp.eq.s32.totalorder %v401, %v575
      %vm652 = vcmp.eq.s32.totalorder %v401, %v578
      %vm653 = vcmp.eq.s32.totalorder %v401, %v581
      %vm654 = vcmp.eq.s32.totalorder %v401, %v584
      %vm655 = vcmp.eq.s32.totalorder %v401, %v587
      %vm656 = vcmp.eq.s32.totalorder %v401, %v590
      %vm657 = vcmp.eq.s32.totalorder %v401, %v593
      %v658 = vsel %vm594, 1, 0
      %v659 = vsel %vm595, 1, 0
      %v660 = vsel %vm596, 1, 0
      %v661 = vsel %vm597, 1, 0
      %v662 = vsel %vm598, 1, 0
      %v663 = vsel %vm599, 1, 0
      %v664 = vsel %vm600, 1, 0
      %v665 = vsel %vm601, 1, 0
      %v666 = vsel %vm602, 1, 0
      %v667 = vsel %vm603, 1, 0
      %v668 = vsel %vm604, 1, 0
      %v669 = vsel %vm605, 1, 0
      %v670 = vsel %vm606, 1, 0
      %v671 = vsel %vm607, 1, 0
      %v672 = vsel %vm608, 1, 0
      %v673 = vsel %vm609, 1, 0
      %v674 = vsel %vm610, 1, 0
      %v675 = vsel %vm611, 1, 0
      %v676 = vsel %vm612, 1, 0
      %v677 = vsel %vm613, 1, 0
      %v678 = vsel %vm614, 1, 0
      %v679 = vsel %vm615, 1, 0
      %v680 = vsel %vm616, 1, 0
      %v681 = vsel %vm617, 1, 0
      %v682 = vsel %vm618, 1, 0
      %v683 = vsel %vm619, 1, 0
      %v684 = vsel %vm620, 1, 0
      %v685 = vsel %vm621, 1, 0
      %v686 = vsel %vm622, 1, 0
      %v687 = vsel %vm623, 1, 0
      %v688 = vsel %vm624, 1, 0
      %v689 = vsel %vm625, 1, 0
      %v690 = vsel %vm626, 1, 0
      %v691 = vsel %vm627, 1, 0
      %v692 = vsel %vm628, 1, 0
      %v693 = vsel %vm629, 1, 0
      %v694 = vsel %vm630, 1, 0
      %v695 = vsel %vm631, 1, 0
      %v696 = vsel %vm632, 1, 0
      %v697 = vsel %vm633, 1, 0
      %v698 = vsel %vm634, 1, 0
      %v699 = vsel %vm635, 1, 0
      %v700 = vsel %vm636, 1, 0
      %v701 = vsel %vm637, 1, 0
      %v702 = vsel %vm638, 1, 0
      %v703 = vsel %vm639, 1, 0
      %v704 = vsel %vm640, 1, 0
      %v705 = vsel %vm641, 1, 0
      %v706 = vsel %vm642, 1, 0
      %v707 = vsel %vm643, 1, 0
      %v708 = vsel %vm644, 1, 0
      %v709 = vsel %vm645, 1, 0
      %v710 = vsel %vm646, 1, 0
      %v711 = vsel %vm647, 1, 0
      %v712 = vsel %vm648, 1, 0
      %v713 = vsel %vm649, 1, 0
      %v714 = vsel %vm650, 1, 0
      %v715 = vsel %vm651, 1, 0
      %v716 = vsel %vm652, 1, 0
      %v717 = vsel %vm653, 1, 0
      %v718 = vsel %vm654, 1, 0
      %v719 = vsel %vm655, 1, 0
      %v720 = vsel %vm656, 1, 0
      %v721 = vsel %vm657, 1, 0
      %v722 = vcvt.s32.f32 %v658
      %v723 = vcvt.s32.f32 %v659
      %v724 = vcvt.s32.f32 %v660
      %v725 = vcvt.s32.f32 %v661
      %v726 = vcvt.s32.f32 %v662
      %v727 = vcvt.s32.f32 %v663
      %v728 = vcvt.s32.f32 %v664
      %v729 = vcvt.s32.f32 %v665
      %v730 = vcvt.s32.f32 %v666
      %v731 = vcvt.s32.f32 %v667
      %v732 = vcvt.s32.f32 %v668
      %v733 = vcvt.s32.f32 %v669
      %v734 = vcvt.s32.f32 %v670
      %v735 = vcvt.s32.f32 %v671
      %v736 = vcvt.s32.f32 %v672
      %v737 = vcvt.s32.f32 %v673
      %v738 = vcvt.s32.f32 %v674
      %v739 = vcvt.s32.f32 %v675
      %v740 = vcvt.s32.f32 %v676
      %v741 = vcvt.s32.f32 %v677
      %v742 = vcvt.s32.f32 %v678
      %v743 = vcvt.s32.f32 %v679
      %v744 = vcvt.s32.f32 %v680
      %v745 = vcvt.s32.f32 %v681
      %v746 = vcvt.s32.f32 %v682
      %v747 = vcvt.s32.f32 %v683
      %v748 = vcvt.s32.f32 %v684
      %v749 = vcvt.s32.f32 %v685
      %v750 = vcvt.s32.f32 %v686
      %v751 = vcvt.s32.f32 %v687
      %v752 = vcvt.s32.f32 %v688
      %v753 = vcvt.s32.f32 %v689
      %v754 = vcvt.s32.f32 %v690
      %v755 = vcvt.s32.f32 %v691
      %v756 = vcvt.s32.f32 %v692
      %v757 = vcvt.s32.f32 %v693
      %v758 = vcvt.s32.f32 %v694
      %v759 = vcvt.s32.f32 %v695
      %v760 = vcvt.s32.f32 %v696
      %v761 = vcvt.s32.f32 %v697
      %v762 = vcvt.s32.f32 %v698
      %v763 = vcvt.s32.f32 %v699
      %v764 = vcvt.s32.f32 %v700
      %v765 = vcvt.s32.f32 %v701
      %v766 = vcvt.s32.f32 %v702
      %v767 = vcvt.s32.f32 %v703
      %v768 = vcvt.s32.f32 %v704
      %v769 = vcvt.s32.f32 %v705
      %v770 = vcvt.s32.f32 %v706
      %v771 = vcvt.s32.f32 %v707
      %v772 = vcvt.s32.f32 %v708
      %v773 = vcvt.s32.f32 %v709
      %v774 = vcvt.s32.f32 %v710
      %v775 = vcvt.s32.f32 %v711
      %v776 = vcvt.s32.f32 %v712
      %v777 = vcvt.s32.f32 %v713
      %v778 = vcvt.s32.f32 %v714
      %v779 = vcvt.s32.f32 %v715
      %v780 = vcvt.s32.f32 %v716
      %v781 = vcvt.s32.f32 %v717
      %v782 = vcvt.s32.f32 %v718
      %v783 = vcvt.s32.f32 %v719
      %v784 = vcvt.s32.f32 %v720
      %v785 = vcvt.s32.f32 %v721
      %v786 = vld [vmem:[%s2] sm:$0xff]
      %v787 = vld [vmem:[%s2 + $0x8] sm:$0xff]
      %v788 = vld [vmem:[%s2 + $0x10] sm:$0xff]
      %v789 = vld [vmem:[%s2 + $0x18] sm:$0xff]
      %v790 = vld [vmem:[%s2 + $0x20] sm:$0xff]
      %v791 = vld [vmem:[%s2 + $0x28] sm:$0xff]
      %v792 = vld [vmem:[%s2 + $0x30] sm:$0xff]
      %v793 = vld [vmem:[%s2 + $0x38] sm:$0xff]
      %vm794 = vcmask 523264
      %v796 = vsel %vm794, %v722, 0
      %v799 = vsel %vm794, %v723, 0
      %v802 = vsel %vm794, %v724, 0
      %v805 = vsel %vm794, %v725, 0
      %v808 = vsel %vm794, %v726, 0
      %v811 = vsel %vm794, %v727, 0
      %v814 = vsel %vm794, %v728, 0
      %v817 = vsel %vm794, %v729, 0
      %v820 = vsel %vm794, %v730, 0
      %v823 = vsel %vm794, %v731, 0
      %v826 = vsel %vm794, %v732, 0
      %v829 = vsel %vm794, %v733, 0
      %v832 = vsel %vm794, %v734, 0
      %v835 = vsel %vm794, %v735, 0
      %v838 = vsel %vm794, %v736, 0
      %v841 = vsel %vm794, %v737, 0
      %v844 = vsel %vm794, %v738, 0
      %v847 = vsel %vm794, %v739, 0
      %v850 = vsel %vm794, %v740, 0
      %v853 = vsel %vm794, %v741, 0
      %v856 = vsel %vm794, %v742, 0
      %v859 = vsel %vm794, %v743, 0
      %v862 = vsel %vm794, %v744, 0
      %v865 = vsel %vm794, %v745, 0
      %v868 = vsel %vm794, %v746, 0
      %v871 = vsel %vm794, %v747, 0
      %v874 = vsel %vm794, %v748, 0
      %v877 = vsel %vm794, %v749, 0
      %v880 = vsel %vm794, %v750, 0
      %v883 = vsel %vm794, %v751, 0
      %v886 = vsel %vm794, %v752, 0
      %v889 = vsel %vm794, %v753, 0
      %v892 = vsel %vm794, %v754, 0
      %v895 = vsel %vm794, %v755, 0
      %v898 = vsel %vm794, %v756, 0
      %v901 = vsel %vm794, %v757, 0
      %v904 = vsel %vm794, %v758, 0
      %v907 = vsel %vm794, %v759, 0
      %v910 = vsel %vm794, %v760, 0
      %v913 = vsel %vm794, %v761, 0
      %v916 = vsel %vm794, %v762, 0
      %v919 = vsel %vm794, %v763, 0
      %v922 = vsel %vm794, %v764, 0
      %v925 = vsel %vm794, %v765, 0
      %v928 = vsel %vm794, %v766, 0
      %v931 = vsel %vm794, %v767, 0
      %v934 = vsel %vm794, %v768, 0
      %v937 = vsel %vm794, %v769, 0
      %v940 = vsel %vm794, %v770, 0
      %v943 = vsel %vm794, %v771, 0
      %v946 = vsel %vm794, %v772, 0
      %v949 = vsel %vm794, %v773, 0
      %v952 = vsel %vm794, %v774, 0
      %v955 = vsel %vm794, %v775, 0
      %v958 = vsel %vm794, %v776, 0
      %v961 = vsel %vm794, %v777, 0
      %v964 = vsel %vm794, %v778, 0
      %v967 = vsel %vm794, %v779, 0
      %v970 = vsel %vm794, %v780, 0
      %v973 = vsel %vm794, %v781, 0
      %v976 = vsel %vm794, %v782, 0
      %v979 = vsel %vm794, %v783, 0
      %v982 = vsel %vm794, %v784, 0
      %v985 = vsel %vm794, %v785, 0
      %987 = vmatprep.subr.mxu0 0.0
      %988 = vmatpush1.msra.mxu0 %v786
      %989 = vmatprep.subr.mxu0 0.0
      %990 = vmatpush1.msra.mxu0 %v787
      %991 = vmatprep.subr.mxu0 0.0
      %992 = vmatpush1.msra.mxu0 %v788
      %993 = vmatprep.subr.mxu0 0.0
      %994 = vmatpush1.msra.mxu0 %v789
      %995 = vmatprep.subr.mxu0 0.0
      %996 = vmatpush1.msra.mxu0 %v790
      %997 = vmatprep.subr.mxu0 0.0
      %998 = vmatpush1.msra.mxu0 %v791
      %999 = vmatprep.subr.mxu0 0.0
      %1000 = vmatpush1.msra.mxu0 %v792
      %1001 = vmatprep.subr.mxu0 0.0
      %1002 = vmatpush1.msra.mxu0 %v793
      %1003 = vmatprep.subr.mxu0 0.0
      %1004 = vmatpush1.msra.mxu0 0.0
      %1005 = vmatprep.subr.mxu0 0.0
      %1006 = vmatpush1.msra.mxu0 0.0
      %1007 = vmatprep.subr.mxu0 0.0
      %1008 = vmatpush1.msra.mxu0 0.0
      %1009 = vmatprep.subr.mxu0 0.0
      %1010 = vmatpush1.msra.mxu0 0.0
      %1011 = vmatprep.subr.mxu0 0.0
      %1012 = vmatpush1.msra.mxu0 0.0
      %1013 = vmatprep.subr.mxu0 0.0
      %1014 = vmatpush1.msra.mxu0 0.0
      %1015 = vmatprep.subr.mxu0 0.0
      %1016 = vmatpush1.msra.mxu0 0.0
      %1017 = vmatprep.subr.mxu0 0.0
      %1018 = vmatpush1.msra.mxu0 0.0
      %1019 = vmatprep.subr.mxu0 0.0
      %1020 = vmatpush1.msra.mxu0 0.0
      %1021 = vmatprep.subr.mxu0 0.0
      %1022 = vmatpush1.msra.mxu0 0.0
      %1023 = vmatprep.subr.mxu0 0.0
      %1024 = vmatpush1.msra.mxu0 0.0
      %1025 = vmatprep.subr.mxu0 0.0
      %1026 = vmatpush1.msra.mxu0 0.0
      %1027 = vmatprep.subr.mxu0 0.0
      %1028 = vmatpush1.msra.mxu0 0.0
      %1029 = vmatprep.subr.mxu0 0.0
      %1030 = vmatpush1.msra.mxu0 0.0
      %1031 = vmatprep.subr.mxu0 0.0
      %1032 = vmatpush1.msra.mxu0 0.0
      %1033 = vmatprep.subr.mxu0 0.0
      %1034 = vmatpush1.msra.mxu0 0.0
      %1035 = vmatprep.subr.mxu0 0.0
      %1036 = vmatpush1.msra.mxu0 0.0
      %1037 = vmatprep.subr.mxu0 0.0
      %1038 = vmatpush1.msra.mxu0 0.0
      %1039 = vmatprep.subr.mxu0 0.0
      %1040 = vmatpush1.msra.mxu0 0.0
      %1041 = vmatprep.subr.mxu0 0.0
      %1042 = vmatpush1.msra.mxu0 0.0
      %1043 = vmatprep.subr.mxu0 0.0
      %1044 = vmatpush1.msra.mxu0 0.0
      %1045 = vmatprep.subr.mxu0 0.0
      %1046 = vmatpush1.msra.mxu0 0.0
      %1047 = vmatprep.subr.mxu0 0.0
      %1048 = vmatpush1.msra.mxu0 0.0
      %1049 = vmatprep.subr.mxu0 0.0
      %1050 = vmatpush1.msra.mxu0 0.0
      %1051 = vmatprep.mubr.f32.mxu0 0.0
      %1052 = vmatmul.mubr.f32.gmra.mrb[0].mxu0 %v796
      %v1053 = vpop.f32.mrb[0].mxu0
      %v1054 = vadd.f32 0.0, %v1053
      %v1055 = vpop.f32.mrb[0].mxu0
      %1056 = vmatprep.mubr.f32.mxu0 0.0
      %1057 = vmatmul.mubr.f32.gmra.mrb[0].mxu0 %v799
      %v1058 = vpop.f32.mrb[0].mxu0
      %v1059 = vadd.f32 0.0, %v1058
      %v1060 = vpop.f32.mrb[0].mxu0
      %1061 = vmatprep.mubr.f32.mxu0 0.0
      %1062 = vmatmul.mubr.f32.gmra.mrb[0].mxu0 %v802
      %v1063 = vpop.f32.mrb[0].mxu0
      %v1064 = vadd.f32 0.0, %v1063
      %v1065 = vpop.f32.mrb[0].mxu0
      %1066 = vmatprep.mubr.f32.mxu0 0.0
      %1067 = vmatmul.mubr.f32.gmra.mrb[0].mxu0 %v805
      %v1068 = vpop.f32.mrb[0].mxu0
      %v1069 = vadd.f32 0.0, %v1068
      %v1070 = vpop.f32.mrb[0].mxu0
      %1071 = vmatprep.mubr.f32.mxu0 0.0
      %1072 = vmatmul.mubr.f32.gmra.mrb[0].mxu0 %v808
      %v1073 = vpop.f32.mrb[0].mxu0
      %v1074 = vadd.f32 0.0, %v1073
      %v1075 = vpop.f32.mrb[0].mxu0
      %1076 = vmatprep.mubr.f32.mxu0 0.0
      %1077 = vmatmul.mubr.f32.gmra.mrb[0].mxu0 %v811
      %v1078 = vpop.f32.mrb[0].mxu0
      %v1079 = vadd.f32 0.0, %v1078
      %v1080 = vpop.f32.mrb[0].mxu0
      %1081 = vmatprep.mubr.f32.mxu0 0.0
      %1082 = vmatmul.mubr.f32.gmra.mrb[0].mxu0 %v814
      %v1083 = vpop.f32.mrb[0].mxu0
      %v1084 = vadd.f32 0.0, %v1083
      %v1085 = vpop.f32.mrb[0].mxu0
      %1086 = vmatprep.mubr.f32.mxu0 0.0
      %1087 = vmatmul.mubr.f32.gmra.mrb[0].mxu0 %v817
      %v1088 = vpop.f32.mrb[0].mxu0
      %v1089 = vadd.f32 0.0, %v1088
      %v1090 = vpop.f32.mrb[0].mxu0
      %1091 = vmatprep.mubr.f32.mxu0 0.0
      %1092 = vmatmul.mubr.f32.gmra.mrb[0].mxu0 %v820
      %v1093 = vpop.f32.mrb[0].mxu0
      %v1094 = vadd.f32 0.0, %v1093
      %v1095 = vpop.f32.mrb[0].mxu0
      %1096 = vmatprep.mubr.f32.mxu0 0.0
      %1097 = vmatmul.mubr.f32.gmra.mrb[0].mxu0 %v823
      %v1098 = vpop.f32.mrb[0].mxu0
      %v1099 = vadd.f32 0.0, %v1098
      %v1100 = vpop.f32.mrb[0].mxu0
      %1101 = vmatprep.mubr.f32.mxu0 0.0
      %1102 = vmatmul.mubr.f32.gmra.mrb[0].mxu0 %v826
      %v1103 = vpop.f32.mrb[0].mxu0
      %v1104 = vadd.f32 0.0, %v1103
      %v1105 = vpop.f32.mrb[0].mxu0
      %1106 = vmatprep.mubr.f32.mxu0 0.0
      %1107 = vmatmul.mubr.f32.gmra.mrb[0].mxu0 %v829
      %v1108 = vpop.f32.mrb[0].mxu0
      %v1109 = vadd.f32 0.0, %v1108
      %v1110 = vpop.f32.mrb[0].mxu0
      %1111 = vmatprep.mubr.f32.mxu0 0.0
      %1112 = vmatmul.mubr.f32.gmra.mrb[0].mxu0 %v832
      %v1113 = vpop.f32.mrb[0].mxu0
      %v1114 = vadd.f32 0.0, %v1113
      %v1115 = vpop.f32.mrb[0].mxu0
      %1116 = vmatprep.mubr.f32.mxu0 0.0
      %1117 = vmatmul.mubr.f32.gmra.mrb[0].mxu0 %v835
      %v1118 = vpop.f32.mrb[0].mxu0
      %v1119 = vadd.f32 0.0, %v1118
      %v1120 = vpop.f32.mrb[0].mxu0
      %1121 = vmatprep.mubr.f32.mxu0 0.0
      %1122 = vmatmul.mubr.f32.gmra.mrb[0].mxu0 %v838
      %v1123 = vpop.f32.mrb[0].mxu0
      %v1124 = vadd.f32 0.0, %v1123
      %v1125 = vpop.f32.mrb[0].mxu0
      %1126 = vmatprep.mubr.f32.mxu0 0.0
      %1127 = vmatmul.mubr.f32.gmra.mrb[0].mxu0 %v841
      %v1128 = vpop.f32.mrb[0].mxu0
      %v1129 = vadd.f32 0.0, %v1128
      %v1130 = vpop.f32.mrb[0].mxu0
      %1131 = vmatprep.mubr.f32.mxu0 0.0
      %1132 = vmatmul.mubr.f32.gmra.mrb[0].mxu0 %v844
      %v1133 = vpop.f32.mrb[0].mxu0
      %v1134 = vadd.f32 0.0, %v1133
      %v1135 = vpop.f32.mrb[0].mxu0
      %1136 = vmatprep.mubr.f32.mxu0 0.0
      %1137 = vmatmul.mubr.f32.gmra.mrb[0].mxu0 %v847
      %v1138 = vpop.f32.mrb[0].mxu0
      %v1139 = vadd.f32 0.0, %v1138
      %v1140 = vpop.f32.mrb[0].mxu0
      %1141 = vmatprep.mubr.f32.mxu0 0.0
      %1142 = vmatmul.mubr.f32.gmra.mrb[0].mxu0 %v850
      %v1143 = vpop.f32.mrb[0].mxu0
      %v1144 = vadd.f32 0.0, %v1143
      %v1145 = vpop.f32.mrb[0].mxu0
      %1146 = vmatprep.mubr.f32.mxu0 0.0
      %1147 = vmatmul.mubr.f32.gmra.mrb[0].mxu0 %v853
      %v1148 = vpop.f32.mrb[0].mxu0
      %v1149 = vadd.f32 0.0, %v1148
      %v1150 = vpop.f32.mrb[0].mxu0
      %1151 = vmatprep.mubr.f32.mxu0 0.0
      %1152 = vmatmul.mubr.f32.gmra.mrb[0].mxu0 %v856
      %v1153 = vpop.f32.mrb[0].mxu0
      %v1154 = vadd.f32 0.0, %v1153
      %v1155 = vpop.f32.mrb[0].mxu0
      %1156 = vmatprep.mubr.f32.mxu0 0.0
      %1157 = vmatmul.mubr.f32.gmra.mrb[0].mxu0 %v859
      %v1158 = vpop.f32.mrb[0].mxu0
      %v1159 = vadd.f32 0.0, %v1158
      %v1160 = vpop.f32.mrb[0].mxu0
      %1161 = vmatprep.mubr.f32.mxu0 0.0
      %1162 = vmatmul.mubr.f32.gmra.mrb[0].mxu0 %v862
      %v1163 = vpop.f32.mrb[0].mxu0
      %v1164 = vadd.f32 0.0, %v1163
      %v1165 = vpop.f32.mrb[0].mxu0
      %1166 = vmatprep.mubr.f32.mxu0 0.0
      %1167 = vmatmul.mubr.f32.gmra.mrb[0].mxu0 %v865
      %v1168 = vpop.f32.mrb[0].mxu0
      %v1169 = vadd.f32 0.0, %v1168
      %v1170 = vpop.f32.mrb[0].mxu0
      %1171 = vmatprep.mubr.f32.mxu0 0.0
      %1172 = vmatmul.mubr.f32.gmra.mrb[0].mxu0 %v868
      %v1173 = vpop.f32.mrb[0].mxu0
      %v1174 = vadd.f32 0.0, %v1173
      %v1175 = vpop.f32.mrb[0].mxu0
      %1176 = vmatprep.mubr.f32.mxu0 0.0
      %1177 = vmatmul.mubr.f32.gmra.mrb[0].mxu0 %v871
      %v1178 = vpop.f32.mrb[0].mxu0
      %v1179 = vadd.f32 0.0, %v1178
      %v1180 = vpop.f32.mrb[0].mxu0
      %1181 = vmatprep.mubr.f32.mxu0 0.0
      %1182 = vmatmul.mubr.f32.gmra.mrb[0].mxu0 %v874
      %v1183 = vpop.f32.mrb[0].mxu0
      %v1184 = vadd.f32 0.0, %v1183
      %v1185 = vpop.f32.mrb[0].mxu0
      %1186 = vmatprep.mubr.f32.mxu0 0.0
      %1187 = vmatmul.mubr.f32.gmra.mrb[0].mxu0 %v877
      %v1188 = vpop.f32.mrb[0].mxu0
      %v1189 = vadd.f32 0.0, %v1188
      %v1190 = vpop.f32.mrb[0].mxu0
      %1191 = vmatprep.mubr.f32.mxu0 0.0
      %1192 = vmatmul.mubr.f32.gmra.mrb[0].mxu0 %v880
      %v1193 = vpop.f32.mrb[0].mxu0
      %v1194 = vadd.f32 0.0, %v1193
      %v1195 = vpop.f32.mrb[0].mxu0
      %1196 = vmatprep.mubr.f32.mxu0 0.0
      %1197 = vmatmul.mubr.f32.gmra.mrb[0].mxu0 %v883
      %v1198 = vpop.f32.mrb[0].mxu0
      %v1199 = vadd.f32 0.0, %v1198
      %v1200 = vpop.f32.mrb[0].mxu0
      %1201 = vmatprep.mubr.f32.mxu0 0.0
      %1202 = vmatmul.mubr.f32.gmra.mrb[0].mxu0 %v886
      %v1203 = vpop.f32.mrb[0].mxu0
      %v1204 = vadd.f32 0.0, %v1203
      %v1205 = vpop.f32.mrb[0].mxu0
      %1206 = vmatprep.mubr.f32.mxu0 0.0
      %1207 = vmatmul.mubr.f32.gmra.mrb[0].mxu0 %v889
      %v1208 = vpop.f32.mrb[0].mxu0
      %v1209 = vadd.f32 0.0, %v1208
      %v1210 = vpop.f32.mrb[0].mxu0
      %1211 = vmatprep.mubr.f32.mxu0 0.0
      %1212 = vmatmul.mubr.f32.gmra.mrb[0].mxu0 %v892
      %v1213 = vpop.f32.mrb[0].mxu0
      %v1214 = vadd.f32 0.0, %v1213
      %v1215 = vpop.f32.mrb[0].mxu0
      %1216 = vmatprep.mubr.f32.mxu0 0.0
      %1217 = vmatmul.mubr.f32.gmra.mrb[0].mxu0 %v895
      %v1218 = vpop.f32.mrb[0].mxu0
      %v1219 = vadd.f32 0.0, %v1218
      %v1220 = vpop.f32.mrb[0].mxu0
      %1221 = vmatprep.mubr.f32.mxu0 0.0
      %1222 = vmatmul.mubr.f32.gmra.mrb[0].mxu0 %v898
      %v1223 = vpop.f32.mrb[0].mxu0
      %v1224 = vadd.f32 0.0, %v1223
      %v1225 = vpop.f32.mrb[0].mxu0
      %1226 = vmatprep.mubr.f32.mxu0 0.0
      %1227 = vmatmul.mubr.f32.gmra.mrb[0].mxu0 %v901
      %v1228 = vpop.f32.mrb[0].mxu0
      %v1229 = vadd.f32 0.0, %v1228
      %v1230 = vpop.f32.mrb[0].mxu0
      %1231 = vmatprep.mubr.f32.mxu0 0.0
      %1232 = vmatmul.mubr.f32.gmra.mrb[0].mxu0 %v904
      %v1233 = vpop.f32.mrb[0].mxu0
      %v1234 = vadd.f32 0.0, %v1233
      %v1235 = vpop.f32.mrb[0].mxu0
      %1236 = vmatprep.mubr.f32.mxu0 0.0
      %1237 = vmatmul.mubr.f32.gmra.mrb[0].mxu0 %v907
      %v1238 = vpop.f32.mrb[0].mxu0
      %v1239 = vadd.f32 0.0, %v1238
      %v1240 = vpop.f32.mrb[0].mxu0
      %1241 = vmatprep.mubr.f32.mxu0 0.0
      %1242 = vmatmul.mubr.f32.gmra.mrb[0].mxu0 %v910
      %v1243 = vpop.f32.mrb[0].mxu0
      %v1244 = vadd.f32 0.0, %v1243
      %v1245 = vpop.f32.mrb[0].mxu0
      %1246 = vmatprep.mubr.f32.mxu0 0.0
      %1247 = vmatmul.mubr.f32.gmra.mrb[0].mxu0 %v913
      %v1248 = vpop.f32.mrb[0].mxu0
      %v1249 = vadd.f32 0.0, %v1248
      %v1250 = vpop.f32.mrb[0].mxu0
      %1251 = vmatprep.mubr.f32.mxu0 0.0
      %1252 = vmatmul.mubr.f32.gmra.mrb[0].mxu0 %v916
      %v1253 = vpop.f32.mrb[0].mxu0
      %v1254 = vadd.f32 0.0, %v1253
      %v1255 = vpop.f32.mrb[0].mxu0
      %1256 = vmatprep.mubr.f32.mxu0 0.0
      %1257 = vmatmul.mubr.f32.gmra.mrb[0].mxu0 %v919
      %v1258 = vpop.f32.mrb[0].mxu0
      %v1259 = vadd.f32 0.0, %v1258
      %v1260 = vpop.f32.mrb[0].mxu0
      %1261 = vmatprep.mubr.f32.mxu0 0.0
      %1262 = vmatmul.mubr.f32.gmra.mrb[0].mxu0 %v922
      %v1263 = vpop.f32.mrb[0].mxu0
      %v1264 = vadd.f32 0.0, %v1263
      %v1265 = vpop.f32.mrb[0].mxu0
      %1266 = vmatprep.mubr.f32.mxu0 0.0
      %1267 = vmatmul.mubr.f32.gmra.mrb[0].mxu0 %v925
      %v1268 = vpop.f32.mrb[0].mxu0
      %v1269 = vadd.f32 0.0, %v1268
      %v1270 = vpop.f32.mrb[0].mxu0
      %1271 = vmatprep.mubr.f32.mxu0 0.0
      %1272 = vmatmul.mubr.f32.gmra.mrb[0].mxu0 %v928
      %v1273 = vpop.f32.mrb[0].mxu0
      %v1274 = vadd.f32 0.0, %v1273
      %v1275 = vpop.f32.mrb[0].mxu0
      %1276 = vmatprep.mubr.f32.mxu0 0.0
      %1277 = vmatmul.mubr.f32.gmra.mrb[0].mxu0 %v931
      %v1278 = vpop.f32.mrb[0].mxu0
      %v1279 = vadd.f32 0.0, %v1278
      %v1280 = vpop.f32.mrb[0].mxu0
      %1281 = vmatprep.mubr.f32.mxu0 0.0
      %1282 = vmatmul.mubr.f32.gmra.mrb[0].mxu0 %v934
      %v1283 = vpop.f32.mrb[0].mxu0
      %v1284 = vadd.f32 0.0, %v1283
      %v1285 = vpop.f32.mrb[0].mxu0
      %1286 = vmatprep.mubr.f32.mxu0 0.0
      %1287 = vmatmul.mubr.f32.gmra.mrb[0].mxu0 %v937
      %v1288 = vpop.f32.mrb[0].mxu0
      %v1289 = vadd.f32 0.0, %v1288
      %v1290 = vpop.f32.mrb[0].mxu0
      %1291 = vmatprep.mubr.f32.mxu0 0.0
      %1292 = vmatmul.mubr.f32.gmra.mrb[0].mxu0 %v940
      %v1293 = vpop.f32.mrb[0].mxu0
      %v1294 = vadd.f32 0.0, %v1293
      %v1295 = vpop.f32.mrb[0].mxu0
      %1296 = vmatprep.mubr.f32.mxu0 0.0
      %1297 = vmatmul.mubr.f32.gmra.mrb[0].mxu0 %v943
      %v1298 = vpop.f32.mrb[0].mxu0
      %v1299 = vadd.f32 0.0, %v1298
      %v1300 = vpop.f32.mrb[0].mxu0
      %1301 = vmatprep.mubr.f32.mxu0 0.0
      %1302 = vmatmul.mubr.f32.gmra.mrb[0].mxu0 %v946
      %v1303 = vpop.f32.mrb[0].mxu0
      %v1304 = vadd.f32 0.0, %v1303
      %v1305 = vpop.f32.mrb[0].mxu0
      %1306 = vmatprep.mubr.f32.mxu0 0.0
      %1307 = vmatmul.mubr.f32.gmra.mrb[0].mxu0 %v949
      %v1308 = vpop.f32.mrb[0].mxu0
      %v1309 = vadd.f32 0.0, %v1308
      %v1310 = vpop.f32.mrb[0].mxu0
      %1311 = vmatprep.mubr.f32.mxu0 0.0
      %1312 = vmatmul.mubr.f32.gmra.mrb[0].mxu0 %v952
      %v1313 = vpop.f32.mrb[0].mxu0
      %v1314 = vadd.f32 0.0, %v1313
      %v1315 = vpop.f32.mrb[0].mxu0
      %1316 = vmatprep.mubr.f32.mxu0 0.0
      %1317 = vmatmul.mubr.f32.gmra.mrb[0].mxu0 %v955
      %v1318 = vpop.f32.mrb[0].mxu0
      %v1319 = vadd.f32 0.0, %v1318
      %v1320 = vpop.f32.mrb[0].mxu0
      %1321 = vmatprep.mubr.f32.mxu0 0.0
      %1322 = vmatmul.mubr.f32.gmra.mrb[0].mxu0 %v958
      %v1323 = vpop.f32.mrb[0].mxu0
      %v1324 = vadd.f32 0.0, %v1323
      %v1325 = vpop.f32.mrb[0].mxu0
      %1326 = vmatprep.mubr.f32.mxu0 0.0
      %1327 = vmatmul.mubr.f32.gmra.mrb[0].mxu0 %v961
      %v1328 = vpop.f32.mrb[0].mxu0
      %v1329 = vadd.f32 0.0, %v1328
      %v1330 = vpop.f32.mrb[0].mxu0
      %1331 = vmatprep.mubr.f32.mxu0 0.0
      %1332 = vmatmul.mubr.f32.gmra.mrb[0].mxu0 %v964
      %v1333 = vpop.f32.mrb[0].mxu0
      %v1334 = vadd.f32 0.0, %v1333
      %v1335 = vpop.f32.mrb[0].mxu0
      %1336 = vmatprep.mubr.f32.mxu0 0.0
      %1337 = vmatmul.mubr.f32.gmra.mrb[0].mxu0 %v967
      %v1338 = vpop.f32.mrb[0].mxu0
      %v1339 = vadd.f32 0.0, %v1338
      %v1340 = vpop.f32.mrb[0].mxu0
      %1341 = vmatprep.mubr.f32.mxu0 0.0
      %1342 = vmatmul.mubr.f32.gmra.mrb[0].mxu0 %v970
      %v1343 = vpop.f32.mrb[0].mxu0
      %v1344 = vadd.f32 0.0, %v1343
      %v1345 = vpop.f32.mrb[0].mxu0
      %1346 = vmatprep.mubr.f32.mxu0 0.0
      %1347 = vmatmul.mubr.f32.gmra.mrb[0].mxu0 %v973
      %v1348 = vpop.f32.mrb[0].mxu0
      %v1349 = vadd.f32 0.0, %v1348
      %v1350 = vpop.f32.mrb[0].mxu0
      %1351 = vmatprep.mubr.f32.mxu0 0.0
      %1352 = vmatmul.mubr.f32.gmra.mrb[0].mxu0 %v976
      %v1353 = vpop.f32.mrb[0].mxu0
      %v1354 = vadd.f32 0.0, %v1353
      %v1355 = vpop.f32.mrb[0].mxu0
      %1356 = vmatprep.mubr.f32.mxu0 0.0
      %1357 = vmatmul.mubr.f32.gmra.mrb[0].mxu0 %v979
      %v1358 = vpop.f32.mrb[0].mxu0
      %v1359 = vadd.f32 0.0, %v1358
      %v1360 = vpop.f32.mrb[0].mxu0
      %1361 = vmatprep.mubr.f32.mxu0 0.0
      %1362 = vmatmul.mubr.f32.gmra.mrb[0].mxu0 %v982
      %v1363 = vpop.f32.mrb[0].mxu0
      %v1364 = vadd.f32 0.0, %v1363
      %v1365 = vpop.f32.mrb[0].mxu0
      %1366 = vmatprep.mubr.f32.mxu0 0.0
      %1367 = vmatmul.mubr.f32.gmra.mrb[0].mxu0 %v985
      %v1368 = vpop.f32.mrb[0].mxu0
      %v1369 = vadd.f32 0.0, %v1368
      %v1370 = vpop.f32.mrb[0].mxu0
      %1371 = vdwg.mxu0
      %v1372 = vld [vmem:[%s296] sm:$0xff]
      %v1373 = vld [vmem:[%s296 + $0x8] sm:$0xff]
      %v1374 = vld [vmem:[%s296 + $0x10] sm:$0xff]
      %v1375 = vld [vmem:[%s296 + $0x18] sm:$0xff]
      %v1376 = vld [vmem:[%s296 + $0x20] sm:$0xff]
      %v1377 = vld [vmem:[%s296 + $0x28] sm:$0xff]
      %v1378 = vld [vmem:[%s296 + $0x30] sm:$0xff]
      %v1379 = vld [vmem:[%s296 + $0x38] sm:$0xff]
      %v1380 = vld [vmem:[%s296 + $0x40] sm:$0xff]
      %v1381 = vld [vmem:[%s296 + $0x48] sm:$0xff]
      %v1382 = vld [vmem:[%s296 + $0x50] sm:$0xff]
      %v1383 = vld [vmem:[%s296 + $0x58] sm:$0xff]
      %v1384 = vld [vmem:[%s296 + $0x60] sm:$0xff]
      %v1385 = vld [vmem:[%s296 + $0x68] sm:$0xff]
      %v1386 = vld [vmem:[%s296 + $0x70] sm:$0xff]
      %v1387 = vld [vmem:[%s296 + $0x78] sm:$0xff]
      %v1388 = vld [vmem:[%s296 + $0x80] sm:$0xff]
      %v1389 = vld [vmem:[%s296 + $0x88] sm:$0xff]
      %v1390 = vld [vmem:[%s296 + $0x90] sm:$0xff]
      %v1391 = vld [vmem:[%s296 + $0x98] sm:$0xff]
      %v1392 = vld [vmem:[%s296 + $0xa0] sm:$0xff]
      %v1393 = vld [vmem:[%s296 + $0xa8] sm:$0xff]
      %v1394 = vld [vmem:[%s296 + $0xb0] sm:$0xff]
      %v1395 = vld [vmem:[%s296 + $0xb8] sm:$0xff]
      %v1396 = vld [vmem:[%s296 + $0xc0] sm:$0xff]
      %v1397 = vld [vmem:[%s296 + $0xc8] sm:$0xff]
      %v1398 = vld [vmem:[%s296 + $0xd0] sm:$0xff]
      %v1399 = vld [vmem:[%s296 + $0xd8] sm:$0xff]
      %v1400 = vld [vmem:[%s296 + $0xe0] sm:$0xff]
      %v1401 = vld [vmem:[%s296 + $0xe8] sm:$0xff]
      %v1402 = vld [vmem:[%s296 + $0xf0] sm:$0xff]
      %v1403 = vld [vmem:[%s296 + $0xf8] sm:$0xff]
      %v1404 = vsub.f32 %v1054, %v1214
      %v1405 = vsub.f32 %v1059, %v1219
      %v1406 = vsub.f32 %v1064, %v1224
      %v1407 = vsub.f32 %v1069, %v1229
      %v1408 = vsub.f32 %v1074, %v1234
      %v1409 = vsub.f32 %v1079, %v1239
      %v1410 = vsub.f32 %v1084, %v1244
      %v1411 = vsub.f32 %v1089, %v1249
      %v1412 = vsub.f32 %v1094, %v1254
      %v1413 = vsub.f32 %v1099, %v1259
      %v1414 = vsub.f32 %v1104, %v1264
      %v1415 = vsub.f32 %v1109, %v1269
      %v1416 = vsub.f32 %v1114, %v1274
      %v1417 = vsub.f32 %v1119, %v1279
      %v1418 = vsub.f32 %v1124, %v1284
      %v1419 = vsub.f32 %v1129, %v1289
      %v1420 = vsub.f32 %v1134, %v1294
      %v1421 = vsub.f32 %v1139, %v1299
      %v1422 = vsub.f32 %v1144, %v1304
      %v1423 = vsub.f32 %v1149, %v1309
      %v1424 = vsub.f32 %v1154, %v1314
      %v1425 = vsub.f32 %v1159, %v1319
      %v1426 = vsub.f32 %v1164, %v1324
      %v1427 = vsub.f32 %v1169, %v1329
      %v1428 = vsub.f32 %v1174, %v1334
      %v1429 = vsub.f32 %v1179, %v1339
      %v1430 = vsub.f32 %v1184, %v1344
      %v1431 = vsub.f32 %v1189, %v1349
      %v1432 = vsub.f32 %v1194, %v1354
      %v1433 = vsub.f32 %v1199, %v1359
      %v1434 = vsub.f32 %v1204, %v1364
      %v1435 = vsub.f32 %v1209, %v1369
      %v1436 = vand.u32 2147483647, %v1404
      %v1437 = vand.u32 2147483647, %v1405
      %v1438 = vand.u32 2147483647, %v1406
      %v1439 = vand.u32 2147483647, %v1407
      %v1440 = vand.u32 2147483647, %v1408
      %v1441 = vand.u32 2147483647, %v1409
      %v1442 = vand.u32 2147483647, %v1410
      %v1443 = vand.u32 2147483647, %v1411
      %v1444 = vand.u32 2147483647, %v1412
      %v1445 = vand.u32 2147483647, %v1413
      %v1446 = vand.u32 2147483647, %v1414
      %v1447 = vand.u32 2147483647, %v1415
      %v1448 = vand.u32 2147483647, %v1416
      %v1449 = vand.u32 2147483647, %v1417
      %v1450 = vand.u32 2147483647, %v1418
      %v1451 = vand.u32 2147483647, %v1419
      %v1452 = vand.u32 2147483647, %v1420
      %v1453 = vand.u32 2147483647, %v1421
      %v1454 = vand.u32 2147483647, %v1422
      %v1455 = vand.u32 2147483647, %v1423
      %v1456 = vand.u32 2147483647, %v1424
      %v1457 = vand.u32 2147483647, %v1425
      %v1458 = vand.u32 2147483647, %v1426
      %v1459 = vand.u32 2147483647, %v1427
      %v1460 = vand.u32 2147483647, %v1428
      %v1461 = vand.u32 2147483647, %v1429
      %v1462 = vand.u32 2147483647, %v1430
      %v1463 = vand.u32 2147483647, %v1431
      %v1464 = vand.u32 2147483647, %v1432
      %v1465 = vand.u32 2147483647, %v1433
      %v1466 = vand.u32 2147483647, %v1434
      %v1467 = vand.u32 2147483647, %v1435
      %1500 = vrot.lane.b32.xlu0 %v1214, 32
      %v1501 = vpop.permute.xlu0 %1500
      %1502 = vrot.lane.b32.xlu0 %v1219, 32
      %v1503 = vpop.permute.xlu0 %1502
      %1504 = vrot.lane.b32.xlu0 %v1224, 32
      %v1505 = vpop.permute.xlu0 %1504
      %1506 = vrot.lane.b32.xlu0 %v1229, 32
      %v1507 = vpop.permute.xlu0 %1506
      %1508 = vrot.lane.b32.xlu0 %v1234, 32
      %v1509 = vpop.permute.xlu0 %1508
      %1510 = vrot.lane.b32.xlu0 %v1239, 32
      %v1511 = vpop.permute.xlu0 %1510
      %1512 = vrot.lane.b32.xlu0 %v1244, 32
      %v1513 = vpop.permute.xlu0 %1512
      %1514 = vrot.lane.b32.xlu0 %v1249, 32
      %v1515 = vpop.permute.xlu0 %1514
      %1516 = vrot.lane.b32.xlu0 %v1254, 32
      %v1517 = vpop.permute.xlu0 %1516
      %1518 = vrot.lane.b32.xlu0 %v1259, 32
      %v1519 = vpop.permute.xlu0 %1518
      %1520 = vrot.lane.b32.xlu0 %v1264, 32
      %v1521 = vpop.permute.xlu0 %1520
      %1522 = vrot.lane.b32.xlu0 %v1269, 32
      %v1523 = vpop.permute.xlu0 %1522
      %1524 = vrot.lane.b32.xlu0 %v1274, 32
      %v1525 = vpop.permute.xlu0 %1524
      %1526 = vrot.lane.b32.xlu0 %v1279, 32
      %v1527 = vpop.permute.xlu0 %1526
      %1528 = vrot.lane.b32.xlu0 %v1284, 32
      %v1529 = vpop.permute.xlu0 %1528
      %1530 = vrot.lane.b32.xlu0 %v1289, 32
      %v1531 = vpop.permute.xlu0 %1530
      %1532 = vrot.lane.b32.xlu0 %v1294, 32
      %v1533 = vpop.permute.xlu0 %1532
      %1534 = vrot.lane.b32.xlu0 %v1299, 32
      %v1535 = vpop.permute.xlu0 %1534
      %1536 = vrot.lane.b32.xlu0 %v1304, 32
      %v1537 = vpop.permute.xlu0 %1536
      %1538 = vrot.lane.b32.xlu0 %v1309, 32
      %v1539 = vpop.permute.xlu0 %1538
      %1540 = vrot.lane.b32.xlu0 %v1314, 32
      %v1541 = vpop.permute.xlu0 %1540
      %1542 = vrot.lane.b32.xlu0 %v1319, 32
      %v1543 = vpop.permute.xlu0 %1542
      %1544 = vrot.lane.b32.xlu0 %v1324, 32
      %v1545 = vpop.permute.xlu0 %1544
      %1546 = vrot.lane.b32.xlu0 %v1329, 32
      %v1547 = vpop.permute.xlu0 %1546
      %1548 = vrot.lane.b32.xlu0 %v1334, 32
      %v1549 = vpop.permute.xlu0 %1548
      %1550 = vrot.lane.b32.xlu0 %v1339, 32
      %v1551 = vpop.permute.xlu0 %1550
      %1552 = vrot.lane.b32.xlu0 %v1344, 32
      %v1553 = vpop.permute.xlu0 %1552
      %1554 = vrot.lane.b32.xlu0 %v1349, 32
      %v1555 = vpop.permute.xlu0 %1554
      %1556 = vrot.lane.b32.xlu0 %v1354, 32
      %v1557 = vpop.permute.xlu0 %1556
      %1558 = vrot.lane.b32.xlu0 %v1359, 32
      %v1559 = vpop.permute.xlu0 %1558
      %1560 = vrot.lane.b32.xlu0 %v1364, 32
      %v1561 = vpop.permute.xlu0 %1560
      %1562 = vrot.lane.b32.xlu0 %v1369, 32
      %v1563 = vpop.permute.xlu0 %1562
      %1628 = vrot.lane.b32.xlu0 %v1372, 64
      %v1629 = vpop.permute.xlu0 %1628
      %1630 = vrot.lane.b32.xlu0 %v1373, 64
      %v1631 = vpop.permute.xlu0 %1630
      %1632 = vrot.lane.b32.xlu0 %v1374, 64
      %v1633 = vpop.permute.xlu0 %1632
      %1634 = vrot.lane.b32.xlu0 %v1375, 64
      %v1635 = vpop.permute.xlu0 %1634
      %1636 = vrot.lane.b32.xlu0 %v1376, 64
      %v1637 = vpop.permute.xlu0 %1636
      %1638 = vrot.lane.b32.xlu0 %v1377, 64
      %v1639 = vpop.permute.xlu0 %1638
      %1640 = vrot.lane.b32.xlu0 %v1378, 64
      %v1641 = vpop.permute.xlu0 %1640
      %1642 = vrot.lane.b32.xlu0 %v1379, 64
      %v1643 = vpop.permute.xlu0 %1642
      %1644 = vrot.lane.b32.xlu0 %v1380, 64
      %v1645 = vpop.permute.xlu0 %1644
      %1646 = vrot.lane.b32.xlu0 %v1381, 64
      %v1647 = vpop.permute.xlu0 %1646
      %1648 = vrot.lane.b32.xlu0 %v1382, 64
      %v1649 = vpop.permute.xlu0 %1648
      %1650 = vrot.lane.b32.xlu0 %v1383, 64
      %v1651 = vpop.permute.xlu0 %1650
      %1652 = vrot.lane.b32.xlu0 %v1384, 64
      %v1653 = vpop.permute.xlu0 %1652
      %1654 = vrot.lane.b32.xlu0 %v1385, 64
      %v1655 = vpop.permute.xlu0 %1654
      %1656 = vrot.lane.b32.xlu0 %v1386, 64
      %v1657 = vpop.permute.xlu0 %1656
      %1658 = vrot.lane.b32.xlu0 %v1387, 64
      %v1659 = vpop.permute.xlu0 %1658
      %1660 = vrot.lane.b32.xlu0 %v1388, 64
      %v1661 = vpop.permute.xlu0 %1660
      %1662 = vrot.lane.b32.xlu0 %v1389, 64
      %v1663 = vpop.permute.xlu0 %1662
      %1664 = vrot.lane.b32.xlu0 %v1390, 64
      %v1665 = vpop.permute.xlu0 %1664
      %1666 = vrot.lane.b32.xlu0 %v1391, 64
      %v1667 = vpop.permute.xlu0 %1666
      %1668 = vrot.lane.b32.xlu0 %v1392, 64
      %v1669 = vpop.permute.xlu0 %1668
      %1670 = vrot.lane.b32.xlu0 %v1393, 64
      %v1671 = vpop.permute.xlu0 %1670
      %1672 = vrot.lane.b32.xlu0 %v1394, 64
      %v1673 = vpop.permute.xlu0 %1672
      %1674 = vrot.lane.b32.xlu0 %v1395, 64
      %v1675 = vpop.permute.xlu0 %1674
      %1676 = vrot.lane.b32.xlu0 %v1396, 64
      %v1677 = vpop.permute.xlu0 %1676
      %1678 = vrot.lane.b32.xlu0 %v1397, 64
      %v1679 = vpop.permute.xlu0 %1678
      %1680 = vrot.lane.b32.xlu0 %v1398, 64
      %v1681 = vpop.permute.xlu0 %1680
      %1682 = vrot.lane.b32.xlu0 %v1399, 64
      %v1683 = vpop.permute.xlu0 %1682
      %1684 = vrot.lane.b32.xlu0 %v1400, 64
      %v1685 = vpop.permute.xlu0 %1684
      %1686 = vrot.lane.b32.xlu0 %v1401, 64
      %v1687 = vpop.permute.xlu0 %1686
      %1688 = vrot.lane.b32.xlu0 %v1402, 64
      %v1689 = vpop.permute.xlu0 %1688
      %1690 = vrot.lane.b32.xlu0 %v1403, 64
      %v1691 = vpop.permute.xlu0 %1690
      %1756 = vrot.lane.b32.xlu0 %v1436, 96
      %v1757 = vpop.permute.xlu0 %1756
      %1758 = vrot.lane.b32.xlu0 %v1437, 96
      %v1759 = vpop.permute.xlu0 %1758
      %1760 = vrot.lane.b32.xlu0 %v1438, 96
      %v1761 = vpop.permute.xlu0 %1760
      %1762 = vrot.lane.b32.xlu0 %v1439, 96
      %v1763 = vpop.permute.xlu0 %1762
      %1764 = vrot.lane.b32.xlu0 %v1440, 96
      %v1765 = vpop.permute.xlu0 %1764
      %1766 = vrot.lane.b32.xlu0 %v1441, 96
      %v1767 = vpop.permute.xlu0 %1766
      %1768 = vrot.lane.b32.xlu0 %v1442, 96
      %v1769 = vpop.permute.xlu0 %1768
      %1770 = vrot.lane.b32.xlu0 %v1443, 96
      %v1771 = vpop.permute.xlu0 %1770
      %1772 = vrot.lane.b32.xlu0 %v1444, 96
      %v1773 = vpop.permute.xlu0 %1772
      %1774 = vrot.lane.b32.xlu0 %v1445, 96
      %v1775 = vpop.permute.xlu0 %1774
      %1776 = vrot.lane.b32.xlu0 %v1446, 96
      %v1777 = vpop.permute.xlu0 %1776
      %1778 = vrot.lane.b32.xlu0 %v1447, 96
      %v1779 = vpop.permute.xlu0 %1778
      %1780 = vrot.lane.b32.xlu0 %v1448, 96
      %v1781 = vpop.permute.xlu0 %1780
      %1782 = vrot.lane.b32.xlu0 %v1449, 96
      %v1783 = vpop.permute.xlu0 %1782
      %1784 = vrot.lane.b32.xlu0 %v1450, 96
      %v1785 = vpop.permute.xlu0 %1784
      %1786 = vrot.lane.b32.xlu0 %v1451, 96
      %v1787 = vpop.permute.xlu0 %1786
      %1788 = vrot.lane.b32.xlu0 %v1452, 96
      %v1789 = vpop.permute.xlu0 %1788
      %1790 = vrot.lane.b32.xlu0 %v1453, 96
      %v1791 = vpop.permute.xlu0 %1790
      %1792 = vrot.lane.b32.xlu0 %v1454, 96
      %v1793 = vpop.permute.xlu0 %1792
      %1794 = vrot.lane.b32.xlu0 %v1455, 96
      %v1795 = vpop.permute.xlu0 %1794
      %1796 = vrot.lane.b32.xlu0 %v1456, 96
      %v1797 = vpop.permute.xlu0 %1796
      %1798 = vrot.lane.b32.xlu0 %v1457, 96
      %v1799 = vpop.permute.xlu0 %1798
      %1800 = vrot.lane.b32.xlu0 %v1458, 96
      %v1801 = vpop.permute.xlu0 %1800
      %1802 = vrot.lane.b32.xlu0 %v1459, 96
      %v1803 = vpop.permute.xlu0 %1802
      %1804 = vrot.lane.b32.xlu0 %v1460, 96
      %v1805 = vpop.permute.xlu0 %1804
      %1806 = vrot.lane.b32.xlu0 %v1461, 96
      %v1807 = vpop.permute.xlu0 %1806
      %1808 = vrot.lane.b32.xlu0 %v1462, 96
      %v1809 = vpop.permute.xlu0 %1808
      %1810 = vrot.lane.b32.xlu0 %v1463, 96
      %v1811 = vpop.permute.xlu0 %1810
      %1812 = vrot.lane.b32.xlu0 %v1464, 96
      %v1813 = vpop.permute.xlu0 %1812
      %1814 = vrot.lane.b32.xlu0 %v1465, 96
      %v1815 = vpop.permute.xlu0 %1814
      %1816 = vrot.lane.b32.xlu0 %v1466, 96
      %v1817 = vpop.permute.xlu0 %1816
      %1818 = vrot.lane.b32.xlu0 %v1467, 96
      %v1819 = vpop.permute.xlu0 %1818
      %vm1852 = vcmask 261120
      %v1853 = vsel %vm1852, %v1054, %v1501
      %v1854 = vsel %vm1852, %v1059, %v1503
      %v1855 = vsel %vm1852, %v1064, %v1505
      %v1856 = vsel %vm1852, %v1069, %v1507
      %v1857 = vsel %vm1852, %v1074, %v1509
      %v1858 = vsel %vm1852, %v1079, %v1511
      %v1859 = vsel %vm1852, %v1084, %v1513
      %v1860 = vsel %vm1852, %v1089, %v1515
      %v1861 = vsel %vm1852, %v1094, %v1517
      %v1862 = vsel %vm1852, %v1099, %v1519
      %v1863 = vsel %vm1852, %v1104, %v1521
      %v1864 = vsel %vm1852, %v1109, %v1523
      %v1865 = vsel %vm1852, %v1114, %v1525
      %v1866 = vsel %vm1852, %v1119, %v1527
      %v1867 = vsel %vm1852, %v1124, %v1529
      %v1868 = vsel %vm1852, %v1129, %v1531
      %v1869 = vsel %vm1852, %v1134, %v1533
      %v1870 = vsel %vm1852, %v1139, %v1535
      %v1871 = vsel %vm1852, %v1144, %v1537
      %v1872 = vsel %vm1852, %v1149, %v1539
      %v1873 = vsel %vm1852, %v1154, %v1541
      %v1874 = vsel %vm1852, %v1159, %v1543
      %v1875 = vsel %vm1852, %v1164, %v1545
      %v1876 = vsel %vm1852, %v1169, %v1547
      %v1877 = vsel %vm1852, %v1174, %v1549
      %v1878 = vsel %vm1852, %v1179, %v1551
      %v1879 = vsel %vm1852, %v1184, %v1553
      %v1880 = vsel %vm1852, %v1189, %v1555
      %v1881 = vsel %vm1852, %v1194, %v1557
      %v1882 = vsel %vm1852, %v1199, %v1559
      %v1883 = vsel %vm1852, %v1204, %v1561
      %v1884 = vsel %vm1852, %v1209, %v1563
      %v1885 = vsel %vm794, %v1853, %v1629
      %v1886 = vsel %vm794, %v1854, %v1631
      %v1887 = vsel %vm794, %v1855, %v1633
      %v1888 = vsel %vm794, %v1856, %v1635
      %v1889 = vsel %vm794, %v1857, %v1637
      %v1890 = vsel %vm794, %v1858, %v1639
      %v1891 = vsel %vm794, %v1859, %v1641
      %v1892 = vsel %vm794, %v1860, %v1643
      %v1893 = vsel %vm794, %v1861, %v1645
      %v1894 = vsel %vm794, %v1862, %v1647
      %v1895 = vsel %vm794, %v1863, %v1649
      %v1896 = vsel %vm794, %v1864, %v1651
      %v1897 = vsel %vm794, %v1865, %v1653
      %v1898 = vsel %vm794, %v1866, %v1655
      %v1899 = vsel %vm794, %v1867, %v1657
      %v1900 = vsel %vm794, %v1868, %v1659
      %v1901 = vsel %vm794, %v1869, %v1661
      %v1902 = vsel %vm794, %v1870, %v1663
      %v1903 = vsel %vm794, %v1871, %v1665
      %v1904 = vsel %vm794, %v1872, %v1667
      %v1905 = vsel %vm794, %v1873, %v1669
      %v1906 = vsel %vm794, %v1874, %v1671
      %v1907 = vsel %vm794, %v1875, %v1673
      %v1908 = vsel %vm794, %v1876, %v1675
      %v1909 = vsel %vm794, %v1877, %v1677
      %v1910 = vsel %vm794, %v1878, %v1679
      %v1911 = vsel %vm794, %v1879, %v1681
      %v1912 = vsel %vm794, %v1880, %v1683
      %v1913 = vsel %vm794, %v1881, %v1685
      %v1914 = vsel %vm794, %v1882, %v1687
      %v1915 = vsel %vm794, %v1883, %v1689
      %v1916 = vsel %vm794, %v1884, %v1691
      %vm1917 = vcmask 785408
      %v1918 = vsel %vm1917, %v1885, %v1757
      %v1919 = vsel %vm1917, %v1886, %v1759
      %v1920 = vsel %vm1917, %v1887, %v1761
      %v1921 = vsel %vm1917, %v1888, %v1763
      %v1922 = vsel %vm1917, %v1889, %v1765
      %v1923 = vsel %vm1917, %v1890, %v1767
      %v1924 = vsel %vm1917, %v1891, %v1769
      %v1925 = vsel %vm1917, %v1892, %v1771
      %v1926 = vsel %vm1917, %v1893, %v1773
      %v1927 = vsel %vm1917, %v1894, %v1775
      %v1928 = vsel %vm1917, %v1895, %v1777
      %v1929 = vsel %vm1917, %v1896, %v1779
      %v1930 = vsel %vm1917, %v1897, %v1781
      %v1931 = vsel %vm1917, %v1898, %v1783
      %v1932 = vsel %vm1917, %v1899, %v1785
      %v1933 = vsel %vm1917, %v1900, %v1787
      %v1934 = vsel %vm1917, %v1901, %v1789
      %v1935 = vsel %vm1917, %v1902, %v1791
      %v1936 = vsel %vm1917, %v1903, %v1793
      %v1937 = vsel %vm1917, %v1904, %v1795
      %v1938 = vsel %vm1917, %v1905, %v1797
      %v1939 = vsel %vm1917, %v1906, %v1799
      %v1940 = vsel %vm1917, %v1907, %v1801
      %v1941 = vsel %vm1917, %v1908, %v1803
      %v1942 = vsel %vm1917, %v1909, %v1805
      %v1943 = vsel %vm1917, %v1910, %v1807
      %v1944 = vsel %vm1917, %v1911, %v1809
      %v1945 = vsel %vm1917, %v1912, %v1811
      %v1946 = vsel %vm1917, %v1913, %v1813
      %v1947 = vsel %vm1917, %v1914, %v1815
      %v1948 = vsel %vm1917, %v1915, %v1817
      %v1949 = vsel %vm1917, %v1916, %v1819
      %v1950 = vld [vmem:[%s3] sm:$0xff]
      %v1951 = vld [vmem:[%s3 + $0x8] sm:$0xff]
      %v1952 = vld [vmem:[%s3 + $0x10] sm:$0xff]
      %v1953 = vld [vmem:[%s3 + $0x18] sm:$0xff]
      %v1954 = vld [vmem:[%s3 + $0x20] sm:$0xff]
      %v1955 = vld [vmem:[%s3 + $0x28] sm:$0xff]
      %v1956 = vld [vmem:[%s3 + $0x30] sm:$0xff]
      %v1957 = vld [vmem:[%s3 + $0x38] sm:$0xff]
      %v1958 = vld [vmem:[%s3 + $0x40] sm:$0xff]
      %v1959 = vld [vmem:[%s3 + $0x48] sm:$0xff]
      %v1960 = vld [vmem:[%s3 + $0x50] sm:$0xff]
      %v1961 = vld [vmem:[%s3 + $0x58] sm:$0xff]
      %v1962 = vld [vmem:[%s3 + $0x60] sm:$0xff]
      %v1963 = vld [vmem:[%s3 + $0x68] sm:$0xff]
      %v1964 = vld [vmem:[%s3 + $0x70] sm:$0xff]
      %v1965 = vld [vmem:[%s3 + $0x78] sm:$0xff]
      %v1966 = vld [vmem:[%s4] sm:$0x1]
      %v1968 = vlaneseq
      %v1969 = vshrl.u32 %v1968, 7
      %v1970 = vsub.s32 0, %v1969
      %v1971 = vrot.slane %v1966, %v1970
      %1973 = vmatprep.subr.mxu0 0.0
      %1974 = vmatpush1.msra.mxu0 %v1950
      %1975 = vmatprep.subr.mxu0 0.0
      %1976 = vmatpush1.msra.mxu0 %v1951
      %1977 = vmatprep.subr.mxu0 0.0
      %1978 = vmatpush1.msra.mxu0 %v1952
      %1979 = vmatprep.subr.mxu0 0.0
      %1980 = vmatpush1.msra.mxu0 %v1953
      %1981 = vmatprep.subr.mxu0 0.0
      %1982 = vmatpush1.msra.mxu0 %v1954
      %1983 = vmatprep.subr.mxu0 0.0
      %1984 = vmatpush1.msra.mxu0 %v1955
      %1985 = vmatprep.subr.mxu0 0.0
      %1986 = vmatpush1.msra.mxu0 %v1956
      %1987 = vmatprep.subr.mxu0 0.0
      %1988 = vmatpush1.msra.mxu0 %v1957
      %1989 = vmatprep.subr.mxu0 0.0
      %1990 = vmatpush1.msra.mxu0 %v1958
      %1991 = vmatprep.subr.mxu0 0.0
      %1992 = vmatpush1.msra.mxu0 %v1959
      %1993 = vmatprep.subr.mxu0 0.0
      %1994 = vmatpush1.msra.mxu0 %v1960
      %1995 = vmatprep.subr.mxu0 0.0
      %1996 = vmatpush1.msra.mxu0 %v1961
      %1997 = vmatprep.subr.mxu0 0.0
      %1998 = vmatpush1.msra.mxu0 %v1962
      %1999 = vmatprep.subr.mxu0 0.0
      %2000 = vmatpush1.msra.mxu0 %v1963
      %2001 = vmatprep.subr.mxu0 0.0
      %2002 = vmatpush1.msra.mxu0 %v1964
      %2003 = vmatprep.subr.mxu0 0.0
      %2004 = vmatpush1.msra.mxu0 %v1965
      %2005 = vmatprep.subr.mxu0 0.0
      %2006 = vmatpush1.msra.mxu0 0.0
      %2007 = vmatprep.subr.mxu0 0.0
      %2008 = vmatpush1.msra.mxu0 0.0
      %2009 = vmatprep.subr.mxu0 0.0
      %2010 = vmatpush1.msra.mxu0 0.0
      %2011 = vmatprep.subr.mxu0 0.0
      %2012 = vmatpush1.msra.mxu0 0.0
      %2013 = vmatprep.subr.mxu0 0.0
      %2014 = vmatpush1.msra.mxu0 0.0
      %2015 = vmatprep.subr.mxu0 0.0
      %2016 = vmatpush1.msra.mxu0 0.0
      %2017 = vmatprep.subr.mxu0 0.0
      %2018 = vmatpush1.msra.mxu0 0.0
      %2019 = vmatprep.subr.mxu0 0.0
      %2020 = vmatpush1.msra.mxu0 0.0
      %2021 = vmatprep.subr.mxu0 0.0
      %2022 = vmatpush1.msra.mxu0 0.0
      %2023 = vmatprep.subr.mxu0 0.0
      %2024 = vmatpush1.msra.mxu0 0.0
      %2025 = vmatprep.subr.mxu0 0.0
      %2026 = vmatpush1.msra.mxu0 0.0
      %2027 = vmatprep.subr.mxu0 0.0
      %2028 = vmatpush1.msra.mxu0 0.0
      %2029 = vmatprep.subr.mxu0 0.0
      %2030 = vmatpush1.msra.mxu0 0.0
      %2031 = vmatprep.subr.mxu0 0.0
      %2032 = vmatpush1.msra.mxu0 0.0
      %2033 = vmatprep.subr.mxu0 0.0
      %2034 = vmatpush1.msra.mxu0 0.0
      %2035 = vmatprep.subr.mxu0 0.0
      %2036 = vmatpush1.msra.mxu0 0.0
      %2037 = vmatprep.mubr.f32.mxu0 0.0
      %2038 = vmatmul.mubr.f32.gmra.mrb[0].mxu0 %v1918
      %v2039 = vpop.f32.mrb[0].mxu0
      %v2040 = vadd.f32 %v1971, %v2039
      %v2041 = vpop.f32.mrb[0].mxu0
      %2042 = vmatprep.mubr.f32.mxu0 0.0
      %2043 = vmatmul.mubr.f32.gmra.mrb[0].mxu0 %v1919
      %v2044 = vpop.f32.mrb[0].mxu0
      %v2045 = vadd.f32 %v1971, %v2044
      %v2046 = vpop.f32.mrb[0].mxu0
      %2047 = vmatprep.mubr.f32.mxu0 0.0
      %2048 = vmatmul.mubr.f32.gmra.mrb[0].mxu0 %v1920
      %v2049 = vpop.f32.mrb[0].mxu0
      %v2050 = vadd.f32 %v1971, %v2049
      %v2051 = vpop.f32.mrb[0].mxu0
      %2052 = vmatprep.mubr.f32.mxu0 0.0
      %2053 = vmatmul.mubr.f32.gmra.mrb[0].mxu0 %v1921
      %v2054 = vpop.f32.mrb[0].mxu0
      %v2055 = vadd.f32 %v1971, %v2054
      %v2056 = vpop.f32.mrb[0].mxu0
      %2057 = vmatprep.mubr.f32.mxu0 0.0
      %2058 = vmatmul.mubr.f32.gmra.mrb[0].mxu0 %v1922
      %v2059 = vpop.f32.mrb[0].mxu0
      %v2060 = vadd.f32 %v1971, %v2059
      %v2061 = vpop.f32.mrb[0].mxu0
      %2062 = vmatprep.mubr.f32.mxu0 0.0
      %2063 = vmatmul.mubr.f32.gmra.mrb[0].mxu0 %v1923
      %v2064 = vpop.f32.mrb[0].mxu0
      %v2065 = vadd.f32 %v1971, %v2064
      %v2066 = vpop.f32.mrb[0].mxu0
      %2067 = vmatprep.mubr.f32.mxu0 0.0
      %2068 = vmatmul.mubr.f32.gmra.mrb[0].mxu0 %v1924
      %v2069 = vpop.f32.mrb[0].mxu0
      %v2070 = vadd.f32 %v1971, %v2069
      %v2071 = vpop.f32.mrb[0].mxu0
      %2072 = vmatprep.mubr.f32.mxu0 0.0
      %2073 = vmatmul.mubr.f32.gmra.mrb[0].mxu0 %v1925
      %v2074 = vpop.f32.mrb[0].mxu0
      %v2075 = vadd.f32 %v1971, %v2074
      %v2076 = vpop.f32.mrb[0].mxu0
      %2077 = vmatprep.mubr.f32.mxu0 0.0
      %2078 = vmatmul.mubr.f32.gmra.mrb[0].mxu0 %v1926
      %v2079 = vpop.f32.mrb[0].mxu0
      %v2080 = vadd.f32 %v1971, %v2079
      %v2081 = vpop.f32.mrb[0].mxu0
      %2082 = vmatprep.mubr.f32.mxu0 0.0
      %2083 = vmatmul.mubr.f32.gmra.mrb[0].mxu0 %v1927
      %v2084 = vpop.f32.mrb[0].mxu0
      %v2085 = vadd.f32 %v1971, %v2084
      %v2086 = vpop.f32.mrb[0].mxu0
      %2087 = vmatprep.mubr.f32.mxu0 0.0
      %2088 = vmatmul.mubr.f32.gmra.mrb[0].mxu0 %v1928
      %v2089 = vpop.f32.mrb[0].mxu0
      %v2090 = vadd.f32 %v1971, %v2089
      %v2091 = vpop.f32.mrb[0].mxu0
      %2092 = vmatprep.mubr.f32.mxu0 0.0
      %2093 = vmatmul.mubr.f32.gmra.mrb[0].mxu0 %v1929
      %v2094 = vpop.f32.mrb[0].mxu0
      %v2095 = vadd.f32 %v1971, %v2094
      %v2096 = vpop.f32.mrb[0].mxu0
      %2097 = vmatprep.mubr.f32.mxu0 0.0
      %2098 = vmatmul.mubr.f32.gmra.mrb[0].mxu0 %v1930
      %v2099 = vpop.f32.mrb[0].mxu0
      %v2100 = vadd.f32 %v1971, %v2099
      %v2101 = vpop.f32.mrb[0].mxu0
      %2102 = vmatprep.mubr.f32.mxu0 0.0
      %2103 = vmatmul.mubr.f32.gmra.mrb[0].mxu0 %v1931
      %v2104 = vpop.f32.mrb[0].mxu0
      %v2105 = vadd.f32 %v1971, %v2104
      %v2106 = vpop.f32.mrb[0].mxu0
      %2107 = vmatprep.mubr.f32.mxu0 0.0
      %2108 = vmatmul.mubr.f32.gmra.mrb[0].mxu0 %v1932
      %v2109 = vpop.f32.mrb[0].mxu0
      %v2110 = vadd.f32 %v1971, %v2109
      %v2111 = vpop.f32.mrb[0].mxu0
      %2112 = vmatprep.mubr.f32.mxu0 0.0
      %2113 = vmatmul.mubr.f32.gmra.mrb[0].mxu0 %v1933
      %v2114 = vpop.f32.mrb[0].mxu0
      %v2115 = vadd.f32 %v1971, %v2114
      %v2116 = vpop.f32.mrb[0].mxu0
      %2117 = vmatprep.mubr.f32.mxu0 0.0
      %2118 = vmatmul.mubr.f32.gmra.mrb[0].mxu0 %v1934
      %v2119 = vpop.f32.mrb[0].mxu0
      %v2120 = vadd.f32 %v1971, %v2119
      %v2121 = vpop.f32.mrb[0].mxu0
      %2122 = vmatprep.mubr.f32.mxu0 0.0
      %2123 = vmatmul.mubr.f32.gmra.mrb[0].mxu0 %v1935
      %v2124 = vpop.f32.mrb[0].mxu0
      %v2125 = vadd.f32 %v1971, %v2124
      %v2126 = vpop.f32.mrb[0].mxu0
      %2127 = vmatprep.mubr.f32.mxu0 0.0
      %2128 = vmatmul.mubr.f32.gmra.mrb[0].mxu0 %v1936
      %v2129 = vpop.f32.mrb[0].mxu0
      %v2130 = vadd.f32 %v1971, %v2129
      %v2131 = vpop.f32.mrb[0].mxu0
      %2132 = vmatprep.mubr.f32.mxu0 0.0
      %2133 = vmatmul.mubr.f32.gmra.mrb[0].mxu0 %v1937
      %v2134 = vpop.f32.mrb[0].mxu0
      %v2135 = vadd.f32 %v1971, %v2134
      %v2136 = vpop.f32.mrb[0].mxu0
      %2137 = vmatprep.mubr.f32.mxu0 0.0
      %2138 = vmatmul.mubr.f32.gmra.mrb[0].mxu0 %v1938
      %v2139 = vpop.f32.mrb[0].mxu0
      %v2140 = vadd.f32 %v1971, %v2139
      %v2141 = vpop.f32.mrb[0].mxu0
      %2142 = vmatprep.mubr.f32.mxu0 0.0
      %2143 = vmatmul.mubr.f32.gmra.mrb[0].mxu0 %v1939
      %v2144 = vpop.f32.mrb[0].mxu0
      %v2145 = vadd.f32 %v1971, %v2144
      %v2146 = vpop.f32.mrb[0].mxu0
      %2147 = vmatprep.mubr.f32.mxu0 0.0
      %2148 = vmatmul.mubr.f32.gmra.mrb[0].mxu0 %v1940
      %v2149 = vpop.f32.mrb[0].mxu0
      %v2150 = vadd.f32 %v1971, %v2149
      %v2151 = vpop.f32.mrb[0].mxu0
      %2152 = vmatprep.mubr.f32.mxu0 0.0
      %2153 = vmatmul.mubr.f32.gmra.mrb[0].mxu0 %v1941
      %v2154 = vpop.f32.mrb[0].mxu0
      %v2155 = vadd.f32 %v1971, %v2154
      %v2156 = vpop.f32.mrb[0].mxu0
      %2157 = vmatprep.mubr.f32.mxu0 0.0
      %2158 = vmatmul.mubr.f32.gmra.mrb[0].mxu0 %v1942
      %v2159 = vpop.f32.mrb[0].mxu0
      %v2160 = vadd.f32 %v1971, %v2159
      %v2161 = vpop.f32.mrb[0].mxu0
      %2162 = vmatprep.mubr.f32.mxu0 0.0
      %2163 = vmatmul.mubr.f32.gmra.mrb[0].mxu0 %v1943
      %v2164 = vpop.f32.mrb[0].mxu0
      %v2165 = vadd.f32 %v1971, %v2164
      %v2166 = vpop.f32.mrb[0].mxu0
      %2167 = vmatprep.mubr.f32.mxu0 0.0
      %2168 = vmatmul.mubr.f32.gmra.mrb[0].mxu0 %v1944
      %v2169 = vpop.f32.mrb[0].mxu0
      %v2170 = vadd.f32 %v1971, %v2169
      %v2171 = vpop.f32.mrb[0].mxu0
      %2172 = vmatprep.mubr.f32.mxu0 0.0
      %2173 = vmatmul.mubr.f32.gmra.mrb[0].mxu0 %v1945
      %v2174 = vpop.f32.mrb[0].mxu0
      %v2175 = vadd.f32 %v1971, %v2174
      %v2176 = vpop.f32.mrb[0].mxu0
      %2177 = vmatprep.mubr.f32.mxu0 0.0
      %2178 = vmatmul.mubr.f32.gmra.mrb[0].mxu0 %v1946
      %v2179 = vpop.f32.mrb[0].mxu0
      %v2180 = vadd.f32 %v1971, %v2179
      %v2181 = vpop.f32.mrb[0].mxu0
      %2182 = vmatprep.mubr.f32.mxu0 0.0
      %2183 = vmatmul.mubr.f32.gmra.mrb[0].mxu0 %v1947
      %v2184 = vpop.f32.mrb[0].mxu0
      %v2185 = vadd.f32 %v1971, %v2184
      %v2186 = vpop.f32.mrb[0].mxu0
      %2187 = vmatprep.mubr.f32.mxu0 0.0
      %2188 = vmatmul.mubr.f32.gmra.mrb[0].mxu0 %v1948
      %v2189 = vpop.f32.mrb[0].mxu0
      %v2190 = vadd.f32 %v1971, %v2189
      %v2191 = vpop.f32.mrb[0].mxu0
      %2192 = vmatprep.mubr.f32.mxu0 0.0
      %2193 = vmatmul.mubr.f32.gmra.mrb[0].mxu0 %v1949
      %v2194 = vpop.f32.mrb[0].mxu0
      %v2195 = vadd.f32 %v1971, %v2194
      %v2196 = vpop.f32.mrb[0].mxu0
      %2197 = vdwg.mxu0
      %v2198 = vmax.f32 %v2040, 0.0
      %v2199 = vmax.f32 %v2045, 0.0
      %v2200 = vmax.f32 %v2050, 0.0
      %v2201 = vmax.f32 %v2055, 0.0
      %v2202 = vmax.f32 %v2060, 0.0
      %v2203 = vmax.f32 %v2065, 0.0
      %v2204 = vmax.f32 %v2070, 0.0
      %v2205 = vmax.f32 %v2075, 0.0
      %v2206 = vmax.f32 %v2080, 0.0
      %v2207 = vmax.f32 %v2085, 0.0
      %v2208 = vmax.f32 %v2090, 0.0
      %v2209 = vmax.f32 %v2095, 0.0
      %v2210 = vmax.f32 %v2100, 0.0
      %v2211 = vmax.f32 %v2105, 0.0
      %v2212 = vmax.f32 %v2110, 0.0
      %v2213 = vmax.f32 %v2115, 0.0
      %v2214 = vmax.f32 %v2120, 0.0
      %v2215 = vmax.f32 %v2125, 0.0
      %v2216 = vmax.f32 %v2130, 0.0
      %v2217 = vmax.f32 %v2135, 0.0
      %v2218 = vmax.f32 %v2140, 0.0
      %v2219 = vmax.f32 %v2145, 0.0
      %v2220 = vmax.f32 %v2150, 0.0
      %v2221 = vmax.f32 %v2155, 0.0
      %v2222 = vmax.f32 %v2160, 0.0
      %v2223 = vmax.f32 %v2165, 0.0
      %v2224 = vmax.f32 %v2170, 0.0
      %v2225 = vmax.f32 %v2175, 0.0
      %v2226 = vmax.f32 %v2180, 0.0
      %v2227 = vmax.f32 %v2185, 0.0
      %v2228 = vmax.f32 %v2190, 0.0
      %v2229 = vmax.f32 %v2195, 0.0
      %v2230 = vld [vmem:[%s5] sm:$0xff]
      %v2231 = vld [vmem:[%s5 + $0x8] sm:$0xff]
      %v2232 = vld [vmem:[%s5 + $0x10] sm:$0xff]
      %v2233 = vld [vmem:[%s5 + $0x18] sm:$0xff]
      %v2234 = vld [vmem:[%s6] sm:$0x1]
      %v2236 = vlaneseq
      %v2237 = vshrl.u32 %v2236, 7
      %v2238 = vsub.s32 0, %v2237
      %v2239 = vrot.slane %v2234, %v2238
      %v2242 = vsel %vm1852, %v2198, 0
      %v2245 = vsel %vm1852, %v2199, 0
      %v2248 = vsel %vm1852, %v2200, 0
      %v2251 = vsel %vm1852, %v2201, 0
      %v2254 = vsel %vm1852, %v2202, 0
      %v2257 = vsel %vm1852, %v2203, 0
      %v2260 = vsel %vm1852, %v2204, 0
      %v2263 = vsel %vm1852, %v2205, 0
      %v2266 = vsel %vm1852, %v2206, 0
      %v2269 = vsel %vm1852, %v2207, 0
      %v2272 = vsel %vm1852, %v2208, 0
      %v2275 = vsel %vm1852, %v2209, 0
      %v2278 = vsel %vm1852, %v2210, 0
      %v2281 = vsel %vm1852, %v2211, 0
      %v2284 = vsel %vm1852, %v2212, 0
      %v2287 = vsel %vm1852, %v2213, 0
      %v2290 = vsel %vm1852, %v2214, 0
      %v2293 = vsel %vm1852, %v2215, 0
      %v2296 = vsel %vm1852, %v2216, 0
      %v2299 = vsel %vm1852, %v2217, 0
      %v2302 = vsel %vm1852, %v2218, 0
      %v2305 = vsel %vm1852, %v2219, 0
      %v2308 = vsel %vm1852, %v2220, 0
      %v2311 = vsel %vm1852, %v2221, 0
      %v2314 = vsel %vm1852, %v2222, 0
      %v2317 = vsel %vm1852, %v2223, 0
      %v2320 = vsel %vm1852, %v2224, 0
      %v2323 = vsel %vm1852, %v2225, 0
      %v2326 = vsel %vm1852, %v2226, 0
      %v2329 = vsel %vm1852, %v2227, 0
      %v2332 = vsel %vm1852, %v2228, 0
      %v2335 = vsel %vm1852, %v2229, 0
      %2337 = vmatprep.subr.mxu0 0.0
      %2338 = vmatpush1.msra.mxu0 %v2230
      %2339 = vmatprep.subr.mxu0 0.0
      %2340 = vmatpush1.msra.mxu0 %v2231
      %2341 = vmatprep.subr.mxu0 0.0
      %2342 = vmatpush1.msra.mxu0 %v2232
      %2343 = vmatprep.subr.mxu0 0.0
      %2344 = vmatpush1.msra.mxu0 %v2233
      %2345 = vmatprep.subr.mxu0 0.0
      %2346 = vmatpush1.msra.mxu0 0.0
      %2347 = vmatprep.subr.mxu0 0.0
      %2348 = vmatpush1.msra.mxu0 0.0
      %2349 = vmatprep.subr.mxu0 0.0
      %2350 = vmatpush1.msra.mxu0 0.0
      %2351 = vmatprep.subr.mxu0 0.0
      %2352 = vmatpush1.msra.mxu0 0.0
      %2353 = vmatprep.subr.mxu0 0.0
      %2354 = vmatpush1.msra.mxu0 0.0
      %2355 = vmatprep.subr.mxu0 0.0
      %2356 = vmatpush1.msra.mxu0 0.0
      %2357 = vmatprep.subr.mxu0 0.0
      %2358 = vmatpush1.msra.mxu0 0.0
      %2359 = vmatprep.subr.mxu0 0.0
      %2360 = vmatpush1.msra.mxu0 0.0
      %2361 = vmatprep.subr.mxu0 0.0
      %2362 = vmatpush1.msra.mxu0 0.0
      %2363 = vmatprep.subr.mxu0 0.0
      %2364 = vmatpush1.msra.mxu0 0.0
      %2365 = vmatprep.subr.mxu0 0.0
      %2366 = vmatpush1.msra.mxu0 0.0
      %2367 = vmatprep.subr.mxu0 0.0
      %2368 = vmatpush1.msra.mxu0 0.0
      %2369 = vmatprep.subr.mxu0 0.0
      %2370 = vmatpush1.msra.mxu0 0.0
      %2371 = vmatprep.subr.mxu0 0.0
      %2372 = vmatpush1.msra.mxu0 0.0
      %2373 = vmatprep.subr.mxu0 0.0
      %2374 = vmatpush1.msra.mxu0 0.0
      %2375 = vmatprep.subr.mxu0 0.0
      %2376 = vmatpush1.msra.mxu0 0.0
      %2377 = vmatprep.subr.mxu0 0.0
      %2378 = vmatpush1.msra.mxu0 0.0
      %2379 = vmatprep.subr.mxu0 0.0
      %2380 = vmatpush1.msra.mxu0 0.0
      %2381 = vmatprep.subr.mxu0 0.0
      %2382 = vmatpush1.msra.mxu0 0.0
      %2383 = vmatprep.subr.mxu0 0.0
      %2384 = vmatpush1.msra.mxu0 0.0
      %2385 = vmatprep.subr.mxu0 0.0
      %2386 = vmatpush1.msra.mxu0 0.0
      %2387 = vmatprep.subr.mxu0 0.0
      %2388 = vmatpush1.msra.mxu0 0.0
      %2389 = vmatprep.subr.mxu0 0.0
      %2390 = vmatpush1.msra.mxu0 0.0
      %2391 = vmatprep.subr.mxu0 0.0
      %2392 = vmatpush1.msra.mxu0 0.0
      %2393 = vmatprep.subr.mxu0 0.0
      %2394 = vmatpush1.msra.mxu0 0.0
      %2395 = vmatprep.subr.mxu0 0.0
      %2396 = vmatpush1.msra.mxu0 0.0
      %2397 = vmatprep.subr.mxu0 0.0
      %2398 = vmatpush1.msra.mxu0 0.0
      %2399 = vmatprep.subr.mxu0 0.0
      %2400 = vmatpush1.msra.mxu0 0.0
      %2401 = vmatprep.mubr.f32.mxu0 0.0
      %2402 = vmatmul.mubr.f32.gmra.mrb[0].mxu0 %v2242
      %v2403 = vpop.f32.mrb[0].mxu0
      %v2404 = vadd.f32 %v2239, %v2403
      %v2405 = vpop.f32.mrb[0].mxu0
      %2406 = vmatprep.mubr.f32.mxu0 0.0
      %2407 = vmatmul.mubr.f32.gmra.mrb[0].mxu0 %v2245
      %v2408 = vpop.f32.mrb[0].mxu0
      %v2409 = vadd.f32 %v2239, %v2408
      %v2410 = vpop.f32.mrb[0].mxu0
      %2411 = vmatprep.mubr.f32.mxu0 0.0
      %2412 = vmatmul.mubr.f32.gmra.mrb[0].mxu0 %v2248
      %v2413 = vpop.f32.mrb[0].mxu0
      %v2414 = vadd.f32 %v2239, %v2413
      %v2415 = vpop.f32.mrb[0].mxu0
      %2416 = vmatprep.mubr.f32.mxu0 0.0
      %2417 = vmatmul.mubr.f32.gmra.mrb[0].mxu0 %v2251
      %v2418 = vpop.f32.mrb[0].mxu0
      %v2419 = vadd.f32 %v2239, %v2418
      %v2420 = vpop.f32.mrb[0].mxu0
      %2421 = vmatprep.mubr.f32.mxu0 0.0
      %2422 = vmatmul.mubr.f32.gmra.mrb[0].mxu0 %v2254
      %v2423 = vpop.f32.mrb[0].mxu0
      %v2424 = vadd.f32 %v2239, %v2423
      %v2425 = vpop.f32.mrb[0].mxu0
      %2426 = vmatprep.mubr.f32.mxu0 0.0
      %2427 = vmatmul.mubr.f32.gmra.mrb[0].mxu0 %v2257
      %v2428 = vpop.f32.mrb[0].mxu0
      %v2429 = vadd.f32 %v2239, %v2428
      %v2430 = vpop.f32.mrb[0].mxu0
      %2431 = vmatprep.mubr.f32.mxu0 0.0
      %2432 = vmatmul.mubr.f32.gmra.mrb[0].mxu0 %v2260
      %v2433 = vpop.f32.mrb[0].mxu0
      %v2434 = vadd.f32 %v2239, %v2433
      %v2435 = vpop.f32.mrb[0].mxu0
      %2436 = vmatprep.mubr.f32.mxu0 0.0
      %2437 = vmatmul.mubr.f32.gmra.mrb[0].mxu0 %v2263
      %v2438 = vpop.f32.mrb[0].mxu0
      %v2439 = vadd.f32 %v2239, %v2438
      %v2440 = vpop.f32.mrb[0].mxu0
      %2441 = vmatprep.mubr.f32.mxu0 0.0
      %2442 = vmatmul.mubr.f32.gmra.mrb[0].mxu0 %v2266
      %v2443 = vpop.f32.mrb[0].mxu0
      %v2444 = vadd.f32 %v2239, %v2443
      %v2445 = vpop.f32.mrb[0].mxu0
      %2446 = vmatprep.mubr.f32.mxu0 0.0
      %2447 = vmatmul.mubr.f32.gmra.mrb[0].mxu0 %v2269
      %v2448 = vpop.f32.mrb[0].mxu0
      %v2449 = vadd.f32 %v2239, %v2448
      %v2450 = vpop.f32.mrb[0].mxu0
      %2451 = vmatprep.mubr.f32.mxu0 0.0
      %2452 = vmatmul.mubr.f32.gmra.mrb[0].mxu0 %v2272
      %v2453 = vpop.f32.mrb[0].mxu0
      %v2454 = vadd.f32 %v2239, %v2453
      %v2455 = vpop.f32.mrb[0].mxu0
      %2456 = vmatprep.mubr.f32.mxu0 0.0
      %2457 = vmatmul.mubr.f32.gmra.mrb[0].mxu0 %v2275
      %v2458 = vpop.f32.mrb[0].mxu0
      %v2459 = vadd.f32 %v2239, %v2458
      %v2460 = vpop.f32.mrb[0].mxu0
      %2461 = vmatprep.mubr.f32.mxu0 0.0
      %2462 = vmatmul.mubr.f32.gmra.mrb[0].mxu0 %v2278
      %v2463 = vpop.f32.mrb[0].mxu0
      %v2464 = vadd.f32 %v2239, %v2463
      %v2465 = vpop.f32.mrb[0].mxu0
      %2466 = vmatprep.mubr.f32.mxu0 0.0
      %2467 = vmatmul.mubr.f32.gmra.mrb[0].mxu0 %v2281
      %v2468 = vpop.f32.mrb[0].mxu0
      %v2469 = vadd.f32 %v2239, %v2468
      %v2470 = vpop.f32.mrb[0].mxu0
      %2471 = vmatprep.mubr.f32.mxu0 0.0
      %2472 = vmatmul.mubr.f32.gmra.mrb[0].mxu0 %v2284
      %v2473 = vpop.f32.mrb[0].mxu0
      %v2474 = vadd.f32 %v2239, %v2473
      %v2475 = vpop.f32.mrb[0].mxu0
      %2476 = vmatprep.mubr.f32.mxu0 0.0
      %2477 = vmatmul.mubr.f32.gmra.mrb[0].mxu0 %v2287
      %v2478 = vpop.f32.mrb[0].mxu0
      %v2479 = vadd.f32 %v2239, %v2478
      %v2480 = vpop.f32.mrb[0].mxu0
      %2481 = vmatprep.mubr.f32.mxu0 0.0
      %2482 = vmatmul.mubr.f32.gmra.mrb[0].mxu0 %v2290
      %v2483 = vpop.f32.mrb[0].mxu0
      %v2484 = vadd.f32 %v2239, %v2483
      %v2485 = vpop.f32.mrb[0].mxu0
      %2486 = vmatprep.mubr.f32.mxu0 0.0
      %2487 = vmatmul.mubr.f32.gmra.mrb[0].mxu0 %v2293
      %v2488 = vpop.f32.mrb[0].mxu0
      %v2489 = vadd.f32 %v2239, %v2488
      %v2490 = vpop.f32.mrb[0].mxu0
      %2491 = vmatprep.mubr.f32.mxu0 0.0
      %2492 = vmatmul.mubr.f32.gmra.mrb[0].mxu0 %v2296
      %v2493 = vpop.f32.mrb[0].mxu0
      %v2494 = vadd.f32 %v2239, %v2493
      %v2495 = vpop.f32.mrb[0].mxu0
      %2496 = vmatprep.mubr.f32.mxu0 0.0
      %2497 = vmatmul.mubr.f32.gmra.mrb[0].mxu0 %v2299
      %v2498 = vpop.f32.mrb[0].mxu0
      %v2499 = vadd.f32 %v2239, %v2498
      %v2500 = vpop.f32.mrb[0].mxu0
      %2501 = vmatprep.mubr.f32.mxu0 0.0
      %2502 = vmatmul.mubr.f32.gmra.mrb[0].mxu0 %v2302
      %v2503 = vpop.f32.mrb[0].mxu0
      %v2504 = vadd.f32 %v2239, %v2503
      %v2505 = vpop.f32.mrb[0].mxu0
      %2506 = vmatprep.mubr.f32.mxu0 0.0
      %2507 = vmatmul.mubr.f32.gmra.mrb[0].mxu0 %v2305
      %v2508 = vpop.f32.mrb[0].mxu0
      %v2509 = vadd.f32 %v2239, %v2508
      %v2510 = vpop.f32.mrb[0].mxu0
      %2511 = vmatprep.mubr.f32.mxu0 0.0
      %2512 = vmatmul.mubr.f32.gmra.mrb[0].mxu0 %v2308
      %v2513 = vpop.f32.mrb[0].mxu0
      %v2514 = vadd.f32 %v2239, %v2513
      %v2515 = vpop.f32.mrb[0].mxu0
      %2516 = vmatprep.mubr.f32.mxu0 0.0
      %2517 = vmatmul.mubr.f32.gmra.mrb[0].mxu0 %v2311
      %v2518 = vpop.f32.mrb[0].mxu0
      %v2519 = vadd.f32 %v2239, %v2518
      %v2520 = vpop.f32.mrb[0].mxu0
      %2521 = vmatprep.mubr.f32.mxu0 0.0
      %2522 = vmatmul.mubr.f32.gmra.mrb[0].mxu0 %v2314
      %v2523 = vpop.f32.mrb[0].mxu0
      %v2524 = vadd.f32 %v2239, %v2523
      %v2525 = vpop.f32.mrb[0].mxu0
      %2526 = vmatprep.mubr.f32.mxu0 0.0
      %2527 = vmatmul.mubr.f32.gmra.mrb[0].mxu0 %v2317
      %v2528 = vpop.f32.mrb[0].mxu0
      %v2529 = vadd.f32 %v2239, %v2528
      %v2530 = vpop.f32.mrb[0].mxu0
      %2531 = vmatprep.mubr.f32.mxu0 0.0
      %2532 = vmatmul.mubr.f32.gmra.mrb[0].mxu0 %v2320
      %v2533 = vpop.f32.mrb[0].mxu0
      %v2534 = vadd.f32 %v2239, %v2533
      %v2535 = vpop.f32.mrb[0].mxu0
      %2536 = vmatprep.mubr.f32.mxu0 0.0
      %2537 = vmatmul.mubr.f32.gmra.mrb[0].mxu0 %v2323
      %v2538 = vpop.f32.mrb[0].mxu0
      %v2539 = vadd.f32 %v2239, %v2538
      %v2540 = vpop.f32.mrb[0].mxu0
      %2541 = vmatprep.mubr.f32.mxu0 0.0
      %2542 = vmatmul.mubr.f32.gmra.mrb[0].mxu0 %v2326
      %v2543 = vpop.f32.mrb[0].mxu0
      %v2544 = vadd.f32 %v2239, %v2543
      %v2545 = vpop.f32.mrb[0].mxu0
      %2546 = vmatprep.mubr.f32.mxu0 0.0
      %2547 = vmatmul.mubr.f32.gmra.mrb[0].mxu0 %v2329
      %v2548 = vpop.f32.mrb[0].mxu0
      %v2549 = vadd.f32 %v2239, %v2548
      %v2550 = vpop.f32.mrb[0].mxu0
      %2551 = vmatprep.mubr.f32.mxu0 0.0
      %2552 = vmatmul.mubr.f32.gmra.mrb[0].mxu0 %v2332
      %v2553 = vpop.f32.mrb[0].mxu0
      %v2554 = vadd.f32 %v2239, %v2553
      %v2555 = vpop.f32.mrb[0].mxu0
      %2556 = vmatprep.mubr.f32.mxu0 0.0
      %2557 = vmatmul.mubr.f32.gmra.mrb[0].mxu0 %v2335
      %v2558 = vpop.f32.mrb[0].mxu0
      %v2559 = vadd.f32 %v2239, %v2558
      %v2560 = vpop.f32.mrb[0].mxu0
      %2561 = vdwg.mxu0
      %vm2562 = vcmask 64512
      %2563 = vst.msk [vmem:[%s302] sm:$0xff] %vm2562, %v2404
      %2564 = vst.msk [vmem:[%s302 + $0x8] sm:$0xff] %vm2562, %v2409
      %2565 = vst.msk [vmem:[%s302 + $0x10] sm:$0xff] %vm2562, %v2414
      %2566 = vst.msk [vmem:[%s302 + $0x18] sm:$0xff] %vm2562, %v2419
      %2567 = vst.msk [vmem:[%s302 + $0x20] sm:$0xff] %vm2562, %v2424
      %2568 = vst.msk [vmem:[%s302 + $0x28] sm:$0xff] %vm2562, %v2429
      %2569 = vst.msk [vmem:[%s302 + $0x30] sm:$0xff] %vm2562, %v2434
      %2570 = vst.msk [vmem:[%s302 + $0x38] sm:$0xff] %vm2562, %v2439
      %2571 = vst.msk [vmem:[%s302 + $0x40] sm:$0xff] %vm2562, %v2444
      %2572 = vst.msk [vmem:[%s302 + $0x48] sm:$0xff] %vm2562, %v2449
      %2573 = vst.msk [vmem:[%s302 + $0x50] sm:$0xff] %vm2562, %v2454
      %2574 = vst.msk [vmem:[%s302 + $0x58] sm:$0xff] %vm2562, %v2459
      %2575 = vst.msk [vmem:[%s302 + $0x60] sm:$0xff] %vm2562, %v2464
      %2576 = vst.msk [vmem:[%s302 + $0x68] sm:$0xff] %vm2562, %v2469
      %2577 = vst.msk [vmem:[%s302 + $0x70] sm:$0xff] %vm2562, %v2474
      %2578 = vst.msk [vmem:[%s302 + $0x78] sm:$0xff] %vm2562, %v2479
      %2579 = vst.msk [vmem:[%s302 + $0x80] sm:$0xff] %vm2562, %v2484
      %2580 = vst.msk [vmem:[%s302 + $0x88] sm:$0xff] %vm2562, %v2489
      %2581 = vst.msk [vmem:[%s302 + $0x90] sm:$0xff] %vm2562, %v2494
      %2582 = vst.msk [vmem:[%s302 + $0x98] sm:$0xff] %vm2562, %v2499
      %2583 = vst.msk [vmem:[%s302 + $0xa0] sm:$0xff] %vm2562, %v2504
      %2584 = vst.msk [vmem:[%s302 + $0xa8] sm:$0xff] %vm2562, %v2509
      %2585 = vst.msk [vmem:[%s302 + $0xb0] sm:$0xff] %vm2562, %v2514
      %2586 = vst.msk [vmem:[%s302 + $0xb8] sm:$0xff] %vm2562, %v2519
      %2587 = vst.msk [vmem:[%s302 + $0xc0] sm:$0xff] %vm2562, %v2524
      %2588 = vst.msk [vmem:[%s302 + $0xc8] sm:$0xff] %vm2562, %v2529
      %2589 = vst.msk [vmem:[%s302 + $0xd0] sm:$0xff] %vm2562, %v2534
      %2590 = vst.msk [vmem:[%s302 + $0xd8] sm:$0xff] %vm2562, %v2539
      %2591 = vst.msk [vmem:[%s302 + $0xe0] sm:$0xff] %vm2562, %v2544
      %2592 = vst.msk [vmem:[%s302 + $0xe8] sm:$0xff] %vm2562, %v2549
      %2593 = vst.msk [vmem:[%s302 + $0xf0] sm:$0xff] %vm2562, %v2554
      %2594 = vst.msk [vmem:[%s302 + $0xf8] sm:$0xff] %vm2562, %v2559
      %s2595 = smul.u32 32, %s18
      %p2596 = scmp.lt.s32.totalorder %s2595, 95
      %s2597 = scalar_select %p2596, %s2595, 95
      %s2598 = smul.addr %s2597, 8
      %s2599 = scalar_lea.vmem %s7, %s2598
      // Predicated region
      $region49: #{tpu_custom_call.1} parent=47 // pred_check
        %p2600 = pneg %p193
      $region50: #{tpu_custom_call.1} parent=47 // pred_check_branch
        %2602 = sbr.rel (%p2600) target = $region52
      $region51: #{tpu_custom_call.1} parent=47 // pred_region
        %s2603 = smul.u32 32, %s18
      $region52: #{tpu_custom_call.1} parent=47 // pred_fallthru
        _
    $region48: #{tpu_custom_call.1} parent=5 // pred_fallthru
      _
    %p2604 = scmp.le.s32.totalorder 2, %s13
    // Predicated region
    $region53: #{tpu_custom_call.1} parent=5 // pred_check
      %p2605 = pneg %p2604
    $region54: #{tpu_custom_call.1} parent=5 // pred_check_branch
      %2607 = sbr.rel (%p2605) target = $region56
    $region55: #{tpu_custom_call.1} parent=5 // pred_region
      %s2608 = ssub.s32 %s13, 2
      // Predicated region
      $region57: #{tpu_custom_call.1} parent=55 // pred_check
        %p2609 = pneg %p199
      $region58: #{tpu_custom_call.1} parent=55 // pred_check_branch
        %2611 = sbr.rel (%p2609) target = $region60
      $region59: #{tpu_custom_call.1} parent=55 // pred_region
        %s2612 = smul.u32 32, %s19
        %p2613 = scmp.lt.s32.totalorder %s2612, 95
        %s2614 = scalar_select %p2613, %s2612, 95
        %s2615 = smul.addr %s2614, 8
        %s2616 = scalar_lea.vmem %s7, %s2615
      $region60: #{tpu_custom_call.1} parent=55 // pred_fallthru
        _
    $region56: #{tpu_custom_call.1} parent=5 // pred_fallthru
      _
  $region6: #{tpu_custom_call.1} parent=0 // loop_footer
    %s17 = sadd.s32 1, %s13
  $region7: #{tpu_custom_call.1} parent=0 // loop_footer_branch
    %12 = sbr.rel target = $region3
  $region8: #{tpu_custom_call.1} parent=0 // loop_exit
    _

</llo_original>
